<compile_context>
chip_gen: v6e
topology: v6e:2x2x1
jax: 0.10.0
libtpu: 0.0.40
codegen_flags: <defaults>
</compile_context>

<pallas_src>
import numpy as np
import jax
import jax.numpy as jnp
from jax import lax
from jax.experimental import pallas as pl
from jax.experimental.pallas import tpu as pltpu


# ----------------------------- Pallas kernel --------------------------------

def _cnn_kernel(x_ref, w1_ref, w2_ref, w3_ref, out_ref):
    # x_ref: (Bt, 51)  -- last lane is the constant-1 bias carrier.
    h1 = jnp.maximum(
        jnp.dot(x_ref[...], w1_ref[...],
                preferred_element_type=jnp.float32,
                precision=lax.Precision.HIGHEST), 0.0)               # (Bt, 55)
    h2 = jnp.maximum(
        jnp.dot(h1, w2_ref[...],
                preferred_element_type=jnp.float32,
                precision=lax.Precision.HIGHEST), 0.0)               # (Bt, 55)
    out_ref[...] = jnp.dot(h2, w3_ref[...],
                           preferred_element_type=jnp.float32,
                           precision=lax.Precision.HIGHEST)          # (Bt, 16)


# ----------------------- host-side weight preparation -----------------------

def _conv_to_toeplitz_np(W, in_ch, in_h, in_w, pad):
    """Expand OIHW conv weight into (in_ch*in_h*in_w, out_ch*out_h*out_w) acting
    on (c, h, w)-flattened activations (PyTorch flatten order). Pure numpy."""
    W = np.asarray(W, dtype=np.float32)
    out_ch, _, kh_, kw_ = W.shape
    out_h = in_h + 2 * pad - kh_ + 1
    out_w = in_w + 2 * pad - kw_ + 1
    T = np.zeros((in_ch * in_h * in_w, out_ch * out_h * out_w), np.float32)
    for o in range(out_ch):
        for oh in range(out_h):
            for ow in range(out_w):
                oi = o * out_h * out_w + oh * out_w + ow
                for c in range(in_ch):
                    for kh in range(kh_):
                        for kw in range(kw_):
                            ih = oh + kh - pad
                            iw = ow + kw - pad
                            if 0 <= ih < in_h and 0 <= iw < in_w:
                                T[c * in_h * in_w + ih * in_w + iw, oi] = W[o, c, kh, kw]
    return T


def _augmented_weights(params):
    """Fold biases into the matrices via an augmented constant-1 column.

    A1: (51, 55)  cols 0..53 = conv1 Toeplitz (+ bias row), col 54 carries 1.
    A2: (55, 55)  cols 0..53 = conv2 Toeplitz (+ bias row), col 54 carries 1.
    A3: (55, 16)  cols 0..8  = linear weight (+ bias row), rest zero-pad.
    NOTE: params must be concrete (host numpy conversion; constant folding).
    """
    W1, b1, W2, b2, W3, b3 = (np.asarray(p, np.float32) for p in params)

    T1 = _conv_to_toeplitz_np(W1, 2, 5, 5, pad=0)                    # (50, 54)
    T2 = _conv_to_toeplitz_np(W2, 6, 3, 3, pad=1)                    # (54, 54)
    b1f = np.repeat(b1, 9)                                           # (54,)
    b2f = np.repeat(b2, 9)                                           # (54,)

    A1 = np.zeros((51, 55), np.float32)
    A1[:50, :54] = T1
    A1[50, :54] = b1f
    A1[50, 54] = 1.0                                                 # carry 1

    A2 = np.zeros((55, 55), np.float32)
    A2[:54, :54] = T2
    A2[54, :54] = b2f
    A2[54, 54] = 1.0                                                 # carry 1

    A3 = np.zeros((55, 16), np.float32)
    A3[:54, :9] = W3.T                                               # (c,h,w) order
    A3[54, :9] = b3

    return jnp.asarray(A1), jnp.asarray(A2), jnp.asarray(A3)


# --------------------------------- wrapper -----------------------------------

def cnn_forward(x_nchw, params, *, b_tile=None):
    """x_nchw: (B, 2, 5, 5) float32 (PyTorch NCHW). Returns (B, 3, 3)."""
    B = x_nchw.shape[0]
    A1, A2, A3 = _augmented_weights(params)

    # Batch-major, lane-dense activations: pure reshape + a constant-1 lane.
    x_flat = x_nchw.reshape(B, 2 * 5 * 5).astype(jnp.float32)        # (B, 50)
    x_aug = jnp.concatenate([x_flat, jnp.ones((B, 1), jnp.float32)], axis=1)  # (B, 51)

    # Batch tiling: big sublane-aligned tiles to amortize per-step overhead,
    # but keep >= 2 tiles when possible so v7x megacore can shard the batch.
    B_aligned = ((B + 7) // 8) * 8
    if b_tile is None:
        b_tile = min(2048, B_aligned)
        if B_aligned >= 16 and b_tile >= B_aligned:
            b_tile = ((B_aligned // 2 + 7) // 8) * 8
    n_tiles = pl.cdiv(B, b_tile)
    B_pad = n_tiles * b_tile
    if B_pad != B:
        x_aug = jnp.pad(x_aug, ((0, B_pad - B), (0, 0)))

    full = lambda i: (0, 0)
    out = pl.pallas_call(
        _cnn_kernel,
        out_shape=jax.ShapeDtypeStruct((B_pad, 16), jnp.float32),
        grid=(n_tiles,),
        in_specs=[
            pl.BlockSpec((b_tile, 51), lambda i: (i, 0)),
            pl.BlockSpec((51, 55), full),
            pl.BlockSpec((55, 55), full),
            pl.BlockSpec((55, 16), full),
        ],
        out_specs=pl.BlockSpec((b_tile, 16), lambda i: (i, 0)),
        compiler_params=pltpu.CompilerParams(
            dimension_semantics=("parallel",)),
    )(x_aug, A1, A2, A3)

    return out[:B, :9].reshape(B, 3, 3)


# ------------------------------- reference -----------------------------------

def cnn_reference(x_nchw, params):
    """Pure-JAX reference matching the PyTorch forward exactly."""
    W1, b1, W2, b2, W3, b3 = params
    dn = ("NCHW", "OIHW", "NCHW")
    h = lax.conv_general_dilated(x_nchw, W1, (1, 1), "VALID",
                                 dimension_numbers=dn,
                                 precision=lax.Precision.HIGHEST)
    h = jnp.maximum(h + b1[None, :, None, None], 0.0)
    h = lax.conv_general_dilated(h, W2, (1, 1), ((1, 1), (1, 1)),
                                 dimension_numbers=dn,
                                 precision=lax.Precision.HIGHEST)
    h = jnp.maximum(h + b2[None, :, None, None], 0.0)
    flat = h.reshape(h.shape[0], -1)          # (B, 6*3*3) in (c, h, w) order
    out = jnp.dot(flat, W3.T, precision=lax.Precision.HIGHEST) + b3
    return out.reshape(-1, 3, 3)


def init_params(key):
    """Deterministic parameter init with the shapes from CNN.__init__."""
    ks = jax.random.split(key, 6)

    def u(k, shape, fan_in):
        bound = 1.0 / jnp.sqrt(fan_in)
        return jax.random.uniform(k, shape, jnp.float32, -bound, bound)

    W1 = u(ks[0], (6, 2, 3, 3), 2 * 3 * 3)
    b1 = u(ks[1], (6,), 2 * 3 * 3)
    W2 = u(ks[2], (6, 6, 3, 3), 6 * 3 * 3)
    b2 = u(ks[3], (6,), 6 * 3 * 3)
    W3 = u(ks[4], (9, 54), 54)
    b3 = u(ks[5], (9,), 54)
    return W1, b1, W2, b2, W3, b3


if __name__ == "__main__":
    key = jax.random.PRNGKey(0)
    k_x, k_p = jax.random.split(key)

    # Forward implies 5x5 spatial input: conv1 (pad 0) -> 3x3, conv2 (pad 1) -> 3x3,
    # flatten 6*3*3 = 54 feeds Linear(54, 9).
    B = 2
    x = jax.random.normal(k_x, (B, 2, 5, 5), jnp.float32)
    params = init_params(k_p)

    out = cnn_forward(x, params)
    out = jax.block_until_ready(out)

    ref = cnn_reference(x, params)
    assert out.shape == (B, 3, 3)
    assert jnp.allclose(out, ref, rtol=1e-5, atol=1e-5), (out, ref)
    print("KERNEL_OK")
</pallas_src>

<mosaic_0001>
module attributes {stable_mosaic.version = 11 : i64} {
  func.func @_cnn_kernel(%arg0: i32, %arg1: memref<8x51xf32, #tpu.memory_space<vmem>>, %arg2: memref<51x55xf32, #tpu.memory_space<vmem>>, %arg3: memref<55x55xf32, #tpu.memory_space<vmem>>, %arg4: memref<55x16xf32, #tpu.memory_space<vmem>>, %arg5: memref<8x16xf32, #tpu.memory_space<vmem>>) attributes {dimension_semantics = [#tpu.dimension_semantics<parallel>], iteration_bounds = array<i64: 1>, scalar_prefetch = 0 : i64, scratch_operands = 0 : i64, tpu.core_type = #tpu.core_type<tc>, window_params = [{transform_indices = @transform_0, window_bounds = array<i64: 8, 51>}, {pipeline_mode = #tpu.pipeline_mode<synchronous>, transform_indices = @transform_1, window_bounds = array<i64: 51, 55>}, {pipeline_mode = #tpu.pipeline_mode<synchronous>, transform_indices = @transform_2, window_bounds = array<i64: 55, 55>}, {pipeline_mode = #tpu.pipeline_mode<synchronous>, transform_indices = @transform_3, window_bounds = array<i64: 55, 16>}, {transform_indices = @transform_4, window_bounds = array<i64: 8, 16>}]} {
    %c0 = arith.constant 0 : index
    %c0_0 = arith.constant 0 : index
    %0 = vector.load %arg1[%c0, %c0_0] : memref<8x51xf32, #tpu.memory_space<vmem>>, vector<8x51xf32>
    %c0_1 = arith.constant 0 : index
    %c0_2 = arith.constant 0 : index
    %1 = vector.load %arg2[%c0_1, %c0_2] : memref<51x55xf32, #tpu.memory_space<vmem>>, vector<51x55xf32>
    %cst = arith.constant dense<0.000000e+00> : vector<8x55xf32>
    %2 = tpu.matmul %0, %1, %cst {dimension_numbers = #tpu.dot_dimension_numbers<[1], [0], [0], [1], [0, 0, 1, 1], [], []>, precision = #tpu.contract_precision<fp32>} : vector<8x51xf32>, vector<51x55xf32>, vector<8x55xf32> -> vector<8x55xf32>
    %cst_3 = arith.constant 0.000000e+00 : f32
    %3 = vector.broadcast %cst_3 : f32 to vector<8x55xf32>
    %4 = arith.maximumf %2, %3 : vector<8x55xf32>
    %c0_4 = arith.constant 0 : index
    %c0_5 = arith.constant 0 : index
    %5 = vector.load %arg3[%c0_4, %c0_5] : memref<55x55xf32, #tpu.memory_space<vmem>>, vector<55x55xf32>
    %cst_6 = arith.constant dense<0.000000e+00> : vector<8x55xf32>
    %6 = tpu.matmul %4, %5, %cst_6 {dimension_numbers = #tpu.dot_dimension_numbers<[1], [0], [0], [1], [0, 0, 1, 1], [], []>, precision = #tpu.contract_precision<fp32>} : vector<8x55xf32>, vector<55x55xf32>, vector<8x55xf32> -> vector<8x55xf32>
    %cst_7 = arith.constant 0.000000e+00 : f32
    %7 = vector.broadcast %cst_7 : f32 to vector<8x55xf32>
    %8 = arith.maximumf %6, %7 : vector<8x55xf32>
    %c0_8 = arith.constant 0 : index
    %c0_9 = arith.constant 0 : index
    %9 = vector.load %arg4[%c0_8, %c0_9] : memref<55x16xf32, #tpu.memory_space<vmem>>, vector<55x16xf32>
    %cst_10 = arith.constant dense<0.000000e+00> : vector<8x16xf32>
    %10 = tpu.matmul %8, %9, %cst_10 {dimension_numbers = #tpu.dot_dimension_numbers<[1], [0], [0], [1], [0, 0, 1, 1], [], []>, precision = #tpu.contract_precision<fp32>} : vector<8x55xf32>, vector<55x16xf32>, vector<8x16xf32> -> vector<8x16xf32>
    %c0_11 = arith.constant 0 : index
    %c0_12 = arith.constant 0 : index
    %11 = vector.load %arg5[%c0_11, %c0_12] : memref<8x16xf32, #tpu.memory_space<vmem>>, vector<8x16xf32>
    tpu.vector_store %arg5[%c0_11, %c0_12], %10 {strides = array<i32>} : memref<8x16xf32, #tpu.memory_space<vmem>>, vector<8x16xf32>,
    return
  }
  func.func @transform_0(%arg0: i32) -> (i32, i32) {
    %c0_i32 = arith.constant 0 : i32
    %c0_i32_0 = arith.constant 0 : i32
    return %arg0, %c0_i32 : i32, i32
  }
  func.func @transform_1(%arg0: i32) -> (i32, i32) {
    %c0_i32 = arith.constant 0 : i32
    %c0_i32_0 = arith.constant 0 : i32
    %c0_i32_1 = arith.constant 0 : i32
    return %c0_i32, %c0_i32_0 : i32, i32
  }
  func.func @transform_2(%arg0: i32) -> (i32, i32) {
    %c0_i32 = arith.constant 0 : i32
    %c0_i32_0 = arith.constant 0 : i32
    %c0_i32_1 = arith.constant 0 : i32
    return %c0_i32, %c0_i32_0 : i32, i32
  }
  func.func @transform_3(%arg0: i32) -> (i32, i32) {
    %c0_i32 = arith.constant 0 : i32
    %c0_i32_0 = arith.constant 0 : i32
    %c0_i32_1 = arith.constant 0 : i32
    return %c0_i32, %c0_i32_0 : i32, i32
  }
  func.func @transform_4(%arg0: i32) -> (i32, i32) {
    %c0_i32 = arith.constant 0 : i32
    %c0_i32_0 = arith.constant 0 : i32
    return %arg0, %c0_i32 : i32, i32
  }
}

</mosaic_0001>

<llo_original>
// kernel: tpu_custom_call.1
$region0: #{tpu_custom_call.1}
  #allocation0 [shape = 'u32[]', space=smem, size = 0x4, offset = 0x4, fixed_abs, tag = 'smem constant byte address 0x4 - core index']
  #allocation1 [shape = 'u32[144,128]{1,0:T(1,128)}', space=vmem, size = 0x12000, scoped, tag = 'internal scratch']
  %s0 = inlined_call_operand.vmem [shape: f32[8,51], index: 0, kind: input, shape index: {}]
  %s1 = inlined_call_operand.vmem [shape: f32[51,55], index: 1, kind: input, shape index: {}]
  %s2 = inlined_call_operand.hbm [shape: f32[55,55], index: 2, kind: input, shape index: {}]
  %s3 = inlined_call_operand.vmem [shape: f32[55,16], index: 3, kind: input, shape index: {}]
  %s4 = inlined_call_operand.hbm [shape: f32[8,16], index: 4, kind: output, shape index: {}]
  %s5 = sld [smem:[#allocation0]]
  $region30: #{tpu_custom_call.1} parent=0
    _
  %s7 = ssub.s32 1, %s5
  %s8 = scalar_select 0, %s7, %s5
  $region1: #{tpu_custom_call.1} parent=0
    #allocation2 [shape = 'u8[28672]{0}', space=vmem, size = 0x7000, scoped, tag = 'input window, operand 2, single buffered']
    #allocation3 [shape = 's32[1]{0}', space=sflag, size = 0x4, scoped, tag = 'scoped memory for tpu_custom_call.1']
    #allocation4 [shape = 's32[1]{0}', space=sflag, size = 0x4, scoped, tag = 'scoped memory for tpu_custom_call.1']
    #allocation5 [shape = 'u8[4096]{0}', space=vmem, size = 0x1000, scoped, tag = 'output window, operand 0, single buffered']
    %9 = vsyncpa [#allocation3], 0
    %10 = vsyncpa [#allocation4], 0
    // Predicated region
    $region2: #{tpu_custom_call.1} parent=1 // pred_check
      _
    $region3: #{tpu_custom_call.1} parent=1 // pred_check_branch
      %12 = sbr.rel (0) target = $region5
    $region4: #{tpu_custom_call.1} parent=1 // pred_region
      _
    $region5: #{tpu_custom_call.1} parent=1 // pred_fallthru
      _
    // Predicated region
    $region6: #{tpu_custom_call.1} parent=1 // pred_check
      _
    $region7: #{tpu_custom_call.1} parent=1 // pred_check_branch
      %14 = sbr.rel (0) target = $region9
    $region8: #{tpu_custom_call.1} parent=1 // pred_region
      _
    $region9: #{tpu_custom_call.1} parent=1 // pred_fallthru
      _
    // Predicated region
    $region10: #{tpu_custom_call.1} parent=1 // pred_check
      _
    $region11: #{tpu_custom_call.1} parent=1 // pred_check_branch
      %16 = sbr.rel (0) target = $region13
    $region12: #{tpu_custom_call.1} parent=1 // pred_region
      %s18 = ssub.s32 896, 896
      %19 = vsyncadd [#allocation3], %s18
      %s20 = sshll.u32 [#allocation2], 4
      %s21 = int_to_ptr.vmem [resolvable:$true] %s20
      %26 = dma.hbm_to_vmem [thread:$0]  %s2, 896, %s21, [#allocation3], 128, 128, 8
    $region13: #{tpu_custom_call.1} parent=1 // pred_fallthru
      _
    // Predicated region
    $region14: #{tpu_custom_call.1} parent=1 // pred_check
      _
    $region15: #{tpu_custom_call.1} parent=1 // pred_check_branch
      %28 = sbr.rel (0) target = $region17
    $region16: #{tpu_custom_call.1} parent=1 // pred_region
      _
    $region17: #{tpu_custom_call.1} parent=1 // pred_fallthru
      _
    // Predicated region
    $region18: #{tpu_custom_call.1} parent=1 // pred_check
      _
    $region19: #{tpu_custom_call.1} parent=1 // pred_check_branch
      %30 = sbr.rel (0) target = $region21
    $region20: #{tpu_custom_call.1} parent=1 // pred_region
      %31 = dma.done [#allocation3], 896
    $region21: #{tpu_custom_call.1} parent=1 // pred_fallthru
      _
    %v32 = vld [vmem:[%s0] sm:$0xff]
    %v33 = vld [vmem:[%s1] sm:$0xff]
    %v34 = vld [vmem:[%s1 + $0x8] sm:$0xff]
    %v35 = vld [vmem:[%s1 + $0x10] sm:$0xff]
    %v36 = vld [vmem:[%s1 + $0x18] sm:$0xff]
    %v37 = vld [vmem:[%s1 + $0x20] sm:$0xff]
    %v38 = vld [vmem:[%s1 + $0x28] sm:$0xff]
    %v39 = vld [vmem:[%s1 + $0x30] sm:$0x7]
    %vm40 = vcmask 416768
    %v42 = vsel %vm40, %v32, 0
    %vm44 = vcmask 1042432
    %v46 = vsel %vm44, %v39, 0
    %48 = vmatprep.subr.mxu0 0.0
    %49 = vmatpush1.msra.mxu0 0.0
    %50 = vmatprep.subr.mxu0 0.0
    %51 = vmatpush1.msra.mxu0 0.0
    %52 = vmatprep.subr.mxu0 0.0
    %53 = vmatpush1.msra.mxu0 0.0
    %54 = vmatprep.subr.mxu0 0.0
    %55 = vmatpush1.msra.mxu0 0.0
    %56 = vmatprep.subr.mxu0 0.0
    %57 = vmatpush1.msra.mxu0 0.0
    %58 = vmatprep.subr.mxu0 0.0
    %59 = vmatpush1.msra.mxu0 0.0
    %60 = vmatprep.subr.mxu0 0.0
    %61 = vmatpush1.msra.mxu0 0.0
    %62 = vmatprep.subr.mxu0 0.0
    %63 = vmatpush1.msra.mxu0 0.0
    %64 = vmatprep.subr.mxu0 0.0
    %65 = vmatpush1.msra.mxu0 0.0
    %66 = vmatprep.subr.mxu0 0.0
    %v67 = vand.u32 %v46, 4294901760
    %68 = vmatpush1.msra.mxu0 %v67
    %69 = vmatprep.subr.mxu0 0.0
    %v70 = vand.u32 %v38, 4294901760
    %71 = vmatpush1.msra.mxu0 %v70
    %72 = vmatprep.subr.mxu0 0.0
    %v73 = vand.u32 %v37, 4294901760
    %74 = vmatpush1.msra.mxu0 %v73
    %75 = vmatprep.subr.mxu0 0.0
    %v76 = vand.u32 %v36, 4294901760
    %77 = vmatpush1.msra.mxu0 %v76
    %78 = vmatprep.subr.mxu0 0.0
    %v79 = vand.u32 %v35, 4294901760
    %80 = vmatpush1.msra.mxu0 %v79
    %81 = vmatprep.subr.mxu0 0.0
    %v82 = vand.u32 %v34, 4294901760
    %83 = vmatpush1.msra.mxu0 %v82
    %84 = vmatprep.subr.mxu0 0.0
    %v85 = vand.u32 %v33, 4294901760
    %86 = vmatpush1.msra.mxu0 %v85
    %87 = vmatprep.subr.mxu0 0.0
    %88 = vmatpush2.msra.mxu0 0.0
    %89 = vmatprep.subr.mxu0 0.0
    %90 = vmatpush2.msra.mxu0 0.0
    %91 = vmatprep.subr.mxu0 0.0
    %92 = vmatpush2.msra.mxu0 0.0
    %93 = vmatprep.subr.mxu0 0.0
    %94 = vmatpush2.msra.mxu0 0.0
    %95 = vmatprep.subr.mxu0 0.0
    %96 = vmatpush2.msra.mxu0 0.0
    %97 = vmatprep.subr.mxu0 0.0
    %98 = vmatpush2.msra.mxu0 0.0
    %99 = vmatprep.subr.mxu0 0.0
    %100 = vmatpush2.msra.mxu0 0.0
    %101 = vmatprep.subr.mxu0 0.0
    %102 = vmatpush2.msra.mxu0 0.0
    %103 = vmatprep.subr.mxu0 0.0
    %104 = vmatpush2.msra.mxu0 0.0
    %105 = vmatprep.subr.mxu0 0.0
    %106 = vmatpush2.msra.mxu0 0.0
    %107 = vmatprep.subr.mxu0 0.0
    %108 = vmatpush2.msra.mxu0 0.0
    %109 = vmatprep.subr.mxu0 0.0
    %110 = vmatpush2.msra.mxu0 0.0
    %111 = vmatprep.subr.mxu0 0.0
    %112 = vmatpush2.msra.mxu0 0.0
    %113 = vmatprep.subr.mxu0 0.0
    %114 = vmatpush2.msra.mxu0 0.0
    %115 = vmatprep.subr.mxu0 0.0
    %116 = vmatpush2.msra.mxu0 0.0
    %117 = vmatprep.subr.mxu0 0.0
    %118 = vmatpush2.msra.mxu0 0.0
    %119 = vmatprep.mubr.f32.mxu0 0.0
    %v120 = vand.u32 %v42, 4294901760
    %v121 = vsub.f32 %v42, %v120
    %v122 = vand.u32 %v121, 4294901760
    %v123 = vsub.f32 %v121, %v122
    %v124 = vand.u32 %v123, 4294901760
    %125 = vmatmul.mubr.f32.gmra.mxu0 %v124
    %v126 = vpop.f32.mrf.mxu0
    %v127 = vadd.f32 0.0, %v126
    %v128 = vpop.f32.mrf.mxu0
    %129 = vdwg.mxu0
    %130 = vmatprep.subr.mxu0 0.0
    %131 = vmatpush1.msra.mxu0 0.0
    %132 = vmatprep.subr.mxu0 0.0
    %133 = vmatpush1.msra.mxu0 0.0
    %134 = vmatprep.subr.mxu0 0.0
    %135 = vmatpush1.msra.mxu0 0.0
    %136 = vmatprep.subr.mxu0 0.0
    %137 = vmatpush1.msra.mxu0 0.0
    %138 = vmatprep.subr.mxu0 0.0
    %139 = vmatpush1.msra.mxu0 0.0
    %140 = vmatprep.subr.mxu0 0.0
    %141 = vmatpush1.msra.mxu0 0.0
    %142 = vmatprep.subr.mxu0 0.0
    %143 = vmatpush1.msra.mxu0 0.0
    %144 = vmatprep.subr.mxu0 0.0
    %145 = vmatpush1.msra.mxu0 0.0
    %146 = vmatprep.subr.mxu0 0.0
    %147 = vmatpush1.msra.mxu0 0.0
    %148 = vmatprep.subr.mxu0 0.0
    %v149 = vand.u32 %v46, 4294901760
    %v150 = vsub.f32 %v46, %v149
    %v151 = vand.u32 %v150, 4294901760
    %v152 = vsub.f32 %v150, %v151
    %v153 = vand.u32 %v152, 4294901760
    %154 = vmatpush1.msra.mxu0 %v153
    %155 = vmatprep.subr.mxu0 0.0
    %v156 = vand.u32 %v38, 4294901760
    %v157 = vsub.f32 %v38, %v156
    %v158 = vand.u32 %v157, 4294901760
    %v159 = vsub.f32 %v157, %v158
    %v160 = vand.u32 %v159, 4294901760
    %161 = vmatpush1.msra.mxu0 %v160
    %162 = vmatprep.subr.mxu0 0.0
    %v163 = vand.u32 %v37, 4294901760
    %v164 = vsub.f32 %v37, %v163
    %v165 = vand.u32 %v164, 4294901760
    %v166 = vsub.f32 %v164, %v165
    %v167 = vand.u32 %v166, 4294901760
    %168 = vmatpush1.msra.mxu0 %v167
    %169 = vmatprep.subr.mxu0 0.0
    %v170 = vand.u32 %v36, 4294901760
    %v171 = vsub.f32 %v36, %v170
    %v172 = vand.u32 %v171, 4294901760
    %v173 = vsub.f32 %v171, %v172
    %v174 = vand.u32 %v173, 4294901760
    %175 = vmatpush1.msra.mxu0 %v174
    %176 = vmatprep.subr.mxu0 0.0
    %v177 = vand.u32 %v35, 4294901760
    %v178 = vsub.f32 %v35, %v177
    %v179 = vand.u32 %v178, 4294901760
    %v180 = vsub.f32 %v178, %v179
    %v181 = vand.u32 %v180, 4294901760
    %182 = vmatpush1.msra.mxu0 %v181
    %183 = vmatprep.subr.mxu0 0.0
    %v184 = vand.u32 %v34, 4294901760
    %v185 = vsub.f32 %v34, %v184
    %v186 = vand.u32 %v185, 4294901760
    %v187 = vsub.f32 %v185, %v186
    %v188 = vand.u32 %v187, 4294901760
    %189 = vmatpush1.msra.mxu0 %v188
    %190 = vmatprep.subr.mxu0 0.0
    %v191 = vand.u32 %v33, 4294901760
    %v192 = vsub.f32 %v33, %v191
    %v193 = vand.u32 %v192, 4294901760
    %v194 = vsub.f32 %v192, %v193
    %v195 = vand.u32 %v194, 4294901760
    %196 = vmatpush1.msra.mxu0 %v195
    %197 = vmatprep.subr.mxu0 0.0
    %198 = vmatpush2.msra.mxu0 0.0
    %199 = vmatprep.subr.mxu0 0.0
    %200 = vmatpush2.msra.mxu0 0.0
    %201 = vmatprep.subr.mxu0 0.0
    %202 = vmatpush2.msra.mxu0 0.0
    %203 = vmatprep.subr.mxu0 0.0
    %204 = vmatpush2.msra.mxu0 0.0
    %205 = vmatprep.subr.mxu0 0.0
    %206 = vmatpush2.msra.mxu0 0.0
    %207 = vmatprep.subr.mxu0 0.0
    %208 = vmatpush2.msra.mxu0 0.0
    %209 = vmatprep.subr.mxu0 0.0
    %210 = vmatpush2.msra.mxu0 0.0
    %211 = vmatprep.subr.mxu0 0.0
    %212 = vmatpush2.msra.mxu0 0.0
    %213 = vmatprep.subr.mxu0 0.0
    %214 = vmatpush2.msra.mxu0 0.0
    %215 = vmatprep.subr.mxu0 0.0
    %216 = vmatpush2.msra.mxu0 0.0
    %217 = vmatprep.subr.mxu0 0.0
    %218 = vmatpush2.msra.mxu0 0.0
    %219 = vmatprep.subr.mxu0 0.0
    %220 = vmatpush2.msra.mxu0 0.0
    %221 = vmatprep.subr.mxu0 0.0
    %222 = vmatpush2.msra.mxu0 0.0
    %223 = vmatprep.subr.mxu0 0.0
    %224 = vmatpush2.msra.mxu0 0.0
    %225 = vmatprep.subr.mxu0 0.0
    %226 = vmatpush2.msra.mxu0 0.0
    %227 = vmatprep.subr.mxu0 0.0
    %228 = vmatpush2.msra.mxu0 0.0
    %229 = vmatprep.mubr.f32.mxu0 0.0
    %v230 = vand.u32 %v42, 4294901760
    %231 = vmatmul.mubr.f32.gmra.mxu0 %v230
    %v232 = vpop.f32.mrf.mxu0
    %v233 = vadd.f32 %v127, %v232
    %v234 = vpop.f32.mrf.mxu0
    %235 = vdwg.mxu0
    %236 = vmatprep.subr.mxu0 0.0
    %237 = vmatpush1.msra.mxu0 0.0
    %238 = vmatprep.subr.mxu0 0.0
    %239 = vmatpush1.msra.mxu0 0.0
    %240 = vmatprep.subr.mxu0 0.0
    %241 = vmatpush1.msra.mxu0 0.0
    %242 = vmatprep.subr.mxu0 0.0
    %243 = vmatpush1.msra.mxu0 0.0
    %244 = vmatprep.subr.mxu0 0.0
    %245 = vmatpush1.msra.mxu0 0.0
    %246 = vmatprep.subr.mxu0 0.0
    %247 = vmatpush1.msra.mxu0 0.0
    %248 = vmatprep.subr.mxu0 0.0
    %249 = vmatpush1.msra.mxu0 0.0
    %250 = vmatprep.subr.mxu0 0.0
    %251 = vmatpush1.msra.mxu0 0.0
    %252 = vmatprep.subr.mxu0 0.0
    %253 = vmatpush1.msra.mxu0 0.0
    %254 = vmatprep.subr.mxu0 0.0
    %v255 = vand.u32 %v46, 4294901760
    %v256 = vsub.f32 %v46, %v255
    %257 = vmatpush1.msra.mxu0 %v256
    %258 = vmatprep.subr.mxu0 0.0
    %v259 = vand.u32 %v38, 4294901760
    %v260 = vsub.f32 %v38, %v259
    %261 = vmatpush1.msra.mxu0 %v260
    %262 = vmatprep.subr.mxu0 0.0
    %v263 = vand.u32 %v37, 4294901760
    %v264 = vsub.f32 %v37, %v263
    %265 = vmatpush1.msra.mxu0 %v264
    %266 = vmatprep.subr.mxu0 0.0
    %v267 = vand.u32 %v36, 4294901760
    %v268 = vsub.f32 %v36, %v267
    %269 = vmatpush1.msra.mxu0 %v268
    %270 = vmatprep.subr.mxu0 0.0
    %v271 = vand.u32 %v35, 4294901760
    %v272 = vsub.f32 %v35, %v271
    %273 = vmatpush1.msra.mxu0 %v272
    %274 = vmatprep.subr.mxu0 0.0
    %v275 = vand.u32 %v34, 4294901760
    %v276 = vsub.f32 %v34, %v275
    %277 = vmatpush1.msra.mxu0 %v276
    %278 = vmatprep.subr.mxu0 0.0
    %v279 = vand.u32 %v33, 4294901760
    %v280 = vsub.f32 %v33, %v279
    %281 = vmatpush1.msra.mxu0 %v280
    %282 = vmatprep.subr.mxu0 0.0
    %283 = vmatpush2.msra.mxu0 0.0
    %284 = vmatprep.subr.mxu0 0.0
    %285 = vmatpush2.msra.mxu0 0.0
    %286 = vmatprep.subr.mxu0 0.0
    %287 = vmatpush2.msra.mxu0 0.0
    %288 = vmatprep.subr.mxu0 0.0
    %289 = vmatpush2.msra.mxu0 0.0
    %290 = vmatprep.subr.mxu0 0.0
    %291 = vmatpush2.msra.mxu0 0.0
    %292 = vmatprep.subr.mxu0 0.0
    %293 = vmatpush2.msra.mxu0 0.0
    %294 = vmatprep.subr.mxu0 0.0
    %295 = vmatpush2.msra.mxu0 0.0
    %296 = vmatprep.subr.mxu0 0.0
    %297 = vmatpush2.msra.mxu0 0.0
    %298 = vmatprep.subr.mxu0 0.0
    %299 = vmatpush2.msra.mxu0 0.0
    %300 = vmatprep.subr.mxu0 0.0
    %301 = vmatpush2.msra.mxu0 0.0
    %302 = vmatprep.subr.mxu0 0.0
    %303 = vmatpush2.msra.mxu0 0.0
    %304 = vmatprep.subr.mxu0 0.0
    %305 = vmatpush2.msra.mxu0 0.0
    %306 = vmatprep.subr.mxu0 0.0
    %307 = vmatpush2.msra.mxu0 0.0
    %308 = vmatprep.subr.mxu0 0.0
    %309 = vmatpush2.msra.mxu0 0.0
    %310 = vmatprep.subr.mxu0 0.0
    %311 = vmatpush2.msra.mxu0 0.0
    %312 = vmatprep.subr.mxu0 0.0
    %313 = vmatpush2.msra.mxu0 0.0
    %314 = vmatprep.mubr.f32.mxu0 0.0
    %v315 = vand.u32 %v42, 4294901760
    %v316 = vsub.f32 %v42, %v315
    %317 = vmatmul.mubr.f32.gmra.mxu0 %v316
    %v318 = vpop.f32.mrf.mxu0
    %v319 = vadd.f32 %v233, %v318
    %v320 = vpop.f32.mrf.mxu0
    %321 = vdwg.mxu0
    %322 = vmatprep.subr.mxu0 0.0
    %323 = vmatpush1.msra.mxu0 0.0
    %324 = vmatprep.subr.mxu0 0.0
    %325 = vmatpush1.msra.mxu0 0.0
    %326 = vmatprep.subr.mxu0 0.0
    %327 = vmatpush1.msra.mxu0 0.0
    %328 = vmatprep.subr.mxu0 0.0
    %329 = vmatpush1.msra.mxu0 0.0
    %330 = vmatprep.subr.mxu0 0.0
    %331 = vmatpush1.msra.mxu0 0.0
    %332 = vmatprep.subr.mxu0 0.0
    %333 = vmatpush1.msra.mxu0 0.0
    %334 = vmatprep.subr.mxu0 0.0
    %335 = vmatpush1.msra.mxu0 0.0
    %336 = vmatprep.subr.mxu0 0.0
    %337 = vmatpush1.msra.mxu0 0.0
    %338 = vmatprep.subr.mxu0 0.0
    %339 = vmatpush1.msra.mxu0 0.0
    %340 = vmatprep.subr.mxu0 0.0
    %v341 = vand.u32 %v46, 4294901760
    %342 = vmatpush1.msra.mxu0 %v341
    %343 = vmatprep.subr.mxu0 0.0
    %v344 = vand.u32 %v38, 4294901760
    %345 = vmatpush1.msra.mxu0 %v344
    %346 = vmatprep.subr.mxu0 0.0
    %v347 = vand.u32 %v37, 4294901760
    %348 = vmatpush1.msra.mxu0 %v347
    %349 = vmatprep.subr.mxu0 0.0
    %v350 = vand.u32 %v36, 4294901760
    %351 = vmatpush1.msra.mxu0 %v350
    %352 = vmatprep.subr.mxu0 0.0
    %v353 = vand.u32 %v35, 4294901760
    %354 = vmatpush1.msra.mxu0 %v353
    %355 = vmatprep.subr.mxu0 0.0
    %v356 = vand.u32 %v34, 4294901760
    %357 = vmatpush1.msra.mxu0 %v356
    %358 = vmatprep.subr.mxu0 0.0
    %v359 = vand.u32 %v33, 4294901760
    %360 = vmatpush1.msra.mxu0 %v359
    %361 = vmatprep.subr.mxu0 0.0
    %362 = vmatpush2.msra.mxu0 0.0
    %363 = vmatprep.subr.mxu0 0.0
    %364 = vmatpush2.msra.mxu0 0.0
    %365 = vmatprep.subr.mxu0 0.0
    %366 = vmatpush2.msra.mxu0 0.0
    %367 = vmatprep.subr.mxu0 0.0
    %368 = vmatpush2.msra.mxu0 0.0
    %369 = vmatprep.subr.mxu0 0.0
    %370 = vmatpush2.msra.mxu0 0.0
    %371 = vmatprep.subr.mxu0 0.0
    %372 = vmatpush2.msra.mxu0 0.0
    %373 = vmatprep.subr.mxu0 0.0
    %374 = vmatpush2.msra.mxu0 0.0
    %375 = vmatprep.subr.mxu0 0.0
    %376 = vmatpush2.msra.mxu0 0.0
    %377 = vmatprep.subr.mxu0 0.0
    %378 = vmatpush2.msra.mxu0 0.0
    %379 = vmatprep.subr.mxu0 0.0
    %380 = vmatpush2.msra.mxu0 0.0
    %381 = vmatprep.subr.mxu0 0.0
    %382 = vmatpush2.msra.mxu0 0.0
    %383 = vmatprep.subr.mxu0 0.0
    %384 = vmatpush2.msra.mxu0 0.0
    %385 = vmatprep.subr.mxu0 0.0
    %386 = vmatpush2.msra.mxu0 0.0
    %387 = vmatprep.subr.mxu0 0.0
    %388 = vmatpush2.msra.mxu0 0.0
    %389 = vmatprep.subr.mxu0 0.0
    %390 = vmatpush2.msra.mxu0 0.0
    %391 = vmatprep.subr.mxu0 0.0
    %392 = vmatpush2.msra.mxu0 0.0
    %393 = vmatprep.mubr.f32.mxu0 0.0
    %v394 = vand.u32 %v42, 4294901760
    %v395 = vsub.f32 %v42, %v394
    %v396 = vand.u32 %v395, 4294901760
    %397 = vmatmul.mubr.f32.gmra.mxu0 %v396
    %v398 = vpop.f32.mrf.mxu0
    %v399 = vadd.f32 %v319, %v398
    %v400 = vpop.f32.mrf.mxu0
    %401 = vdwg.mxu0
    %402 = vmatprep.subr.mxu0 0.0
    %403 = vmatpush1.msra.mxu0 0.0
    %404 = vmatprep.subr.mxu0 0.0
    %405 = vmatpush1.msra.mxu0 0.0
    %406 = vmatprep.subr.mxu0 0.0
    %407 = vmatpush1.msra.mxu0 0.0
    %408 = vmatprep.subr.mxu0 0.0
    %409 = vmatpush1.msra.mxu0 0.0
    %410 = vmatprep.subr.mxu0 0.0
    %411 = vmatpush1.msra.mxu0 0.0
    %412 = vmatprep.subr.mxu0 0.0
    %413 = vmatpush1.msra.mxu0 0.0
    %414 = vmatprep.subr.mxu0 0.0
    %415 = vmatpush1.msra.mxu0 0.0
    %416 = vmatprep.subr.mxu0 0.0
    %417 = vmatpush1.msra.mxu0 0.0
    %418 = vmatprep.subr.mxu0 0.0
    %419 = vmatpush1.msra.mxu0 0.0
    %420 = vmatprep.subr.mxu0 0.0
    %v421 = vand.u32 %v46, 4294901760
    %v422 = vsub.f32 %v46, %v421
    %v423 = vand.u32 %v422, 4294901760
    %424 = vmatpush1.msra.mxu0 %v423
    %425 = vmatprep.subr.mxu0 0.0
    %v426 = vand.u32 %v38, 4294901760
    %v427 = vsub.f32 %v38, %v426
    %v428 = vand.u32 %v427, 4294901760
    %429 = vmatpush1.msra.mxu0 %v428
    %430 = vmatprep.subr.mxu0 0.0
    %v431 = vand.u32 %v37, 4294901760
    %v432 = vsub.f32 %v37, %v431
    %v433 = vand.u32 %v432, 4294901760
    %434 = vmatpush1.msra.mxu0 %v433
    %435 = vmatprep.subr.mxu0 0.0
    %v436 = vand.u32 %v36, 4294901760
    %v437 = vsub.f32 %v36, %v436
    %v438 = vand.u32 %v437, 4294901760
    %439 = vmatpush1.msra.mxu0 %v438
    %440 = vmatprep.subr.mxu0 0.0
    %v441 = vand.u32 %v35, 4294901760
    %v442 = vsub.f32 %v35, %v441
    %v443 = vand.u32 %v442, 4294901760
    %444 = vmatpush1.msra.mxu0 %v443
    %445 = vmatprep.subr.mxu0 0.0
    %v446 = vand.u32 %v34, 4294901760
    %v447 = vsub.f32 %v34, %v446
    %v448 = vand.u32 %v447, 4294901760
    %449 = vmatpush1.msra.mxu0 %v448
    %450 = vmatprep.subr.mxu0 0.0
    %v451 = vand.u32 %v33, 4294901760
    %v452 = vsub.f32 %v33, %v451
    %v453 = vand.u32 %v452, 4294901760
    %454 = vmatpush1.msra.mxu0 %v453
    %455 = vmatprep.subr.mxu0 0.0
    %456 = vmatpush2.msra.mxu0 0.0
    %457 = vmatprep.subr.mxu0 0.0
    %458 = vmatpush2.msra.mxu0 0.0
    %459 = vmatprep.subr.mxu0 0.0
    %460 = vmatpush2.msra.mxu0 0.0
    %461 = vmatprep.subr.mxu0 0.0
    %462 = vmatpush2.msra.mxu0 0.0
    %463 = vmatprep.subr.mxu0 0.0
    %464 = vmatpush2.msra.mxu0 0.0
    %465 = vmatprep.subr.mxu0 0.0
    %466 = vmatpush2.msra.mxu0 0.0
    %467 = vmatprep.subr.mxu0 0.0
    %468 = vmatpush2.msra.mxu0 0.0
    %469 = vmatprep.subr.mxu0 0.0
    %470 = vmatpush2.msra.mxu0 0.0
    %471 = vmatprep.subr.mxu0 0.0
    %472 = vmatpush2.msra.mxu0 0.0
    %473 = vmatprep.subr.mxu0 0.0
    %474 = vmatpush2.msra.mxu0 0.0
    %475 = vmatprep.subr.mxu0 0.0
    %476 = vmatpush2.msra.mxu0 0.0
    %477 = vmatprep.subr.mxu0 0.0
    %478 = vmatpush2.msra.mxu0 0.0
    %479 = vmatprep.subr.mxu0 0.0
    %480 = vmatpush2.msra.mxu0 0.0
    %481 = vmatprep.subr.mxu0 0.0
    %482 = vmatpush2.msra.mxu0 0.0
    %483 = vmatprep.subr.mxu0 0.0
    %484 = vmatpush2.msra.mxu0 0.0
    %485 = vmatprep.subr.mxu0 0.0
    %486 = vmatpush2.msra.mxu0 0.0
    %487 = vmatprep.mubr.f32.mxu0 0.0
    %v488 = vand.u32 %v42, 4294901760
    %489 = vmatmul.mubr.f32.gmra.mxu0 %v488
    %v490 = vpop.f32.mrf.mxu0
    %v491 = vadd.f32 %v399, %v490
    %v492 = vpop.f32.mrf.mxu0
    %493 = vdwg.mxu0
    %494 = vmatprep.subr.mxu0 0.0
    %495 = vmatpush1.msra.mxu0 0.0
    %496 = vmatprep.subr.mxu0 0.0
    %497 = vmatpush1.msra.mxu0 0.0
    %498 = vmatprep.subr.mxu0 0.0
    %499 = vmatpush1.msra.mxu0 0.0
    %500 = vmatprep.subr.mxu0 0.0
    %501 = vmatpush1.msra.mxu0 0.0
    %502 = vmatprep.subr.mxu0 0.0
    %503 = vmatpush1.msra.mxu0 0.0
    %504 = vmatprep.subr.mxu0 0.0
    %505 = vmatpush1.msra.mxu0 0.0
    %506 = vmatprep.subr.mxu0 0.0
    %507 = vmatpush1.msra.mxu0 0.0
    %508 = vmatprep.subr.mxu0 0.0
    %509 = vmatpush1.msra.mxu0 0.0
    %510 = vmatprep.subr.mxu0 0.0
    %511 = vmatpush1.msra.mxu0 0.0
    %512 = vmatprep.subr.mxu0 0.0
    %v513 = vand.u32 %v46, 4294901760
    %514 = vmatpush1.msra.mxu0 %v513
    %515 = vmatprep.subr.mxu0 0.0
    %v516 = vand.u32 %v38, 4294901760
    %517 = vmatpush1.msra.mxu0 %v516
    %518 = vmatprep.subr.mxu0 0.0
    %v519 = vand.u32 %v37, 4294901760
    %520 = vmatpush1.msra.mxu0 %v519
    %521 = vmatprep.subr.mxu0 0.0
    %v522 = vand.u32 %v36, 4294901760
    %523 = vmatpush1.msra.mxu0 %v522
    %524 = vmatprep.subr.mxu0 0.0
    %v525 = vand.u32 %v35, 4294901760
    %526 = vmatpush1.msra.mxu0 %v525
    %527 = vmatprep.subr.mxu0 0.0
    %v528 = vand.u32 %v34, 4294901760
    %529 = vmatpush1.msra.mxu0 %v528
    %530 = vmatprep.subr.mxu0 0.0
    %v531 = vand.u32 %v33, 4294901760
    %532 = vmatpush1.msra.mxu0 %v531
    %533 = vmatprep.subr.mxu0 0.0
    %534 = vmatpush2.msra.mxu0 0.0
    %535 = vmatprep.subr.mxu0 0.0
    %536 = vmatpush2.msra.mxu0 0.0
    %537 = vmatprep.subr.mxu0 0.0
    %538 = vmatpush2.msra.mxu0 0.0
    %539 = vmatprep.subr.mxu0 0.0
    %540 = vmatpush2.msra.mxu0 0.0
    %541 = vmatprep.subr.mxu0 0.0
    %542 = vmatpush2.msra.mxu0 0.0
    %543 = vmatprep.subr.mxu0 0.0
    %544 = vmatpush2.msra.mxu0 0.0
    %545 = vmatprep.subr.mxu0 0.0
    %546 = vmatpush2.msra.mxu0 0.0
    %547 = vmatprep.subr.mxu0 0.0
    %548 = vmatpush2.msra.mxu0 0.0
    %549 = vmatprep.subr.mxu0 0.0
    %550 = vmatpush2.msra.mxu0 0.0
    %551 = vmatprep.subr.mxu0 0.0
    %552 = vmatpush2.msra.mxu0 0.0
    %553 = vmatprep.subr.mxu0 0.0
    %554 = vmatpush2.msra.mxu0 0.0
    %555 = vmatprep.subr.mxu0 0.0
    %556 = vmatpush2.msra.mxu0 0.0
    %557 = vmatprep.subr.mxu0 0.0
    %558 = vmatpush2.msra.mxu0 0.0
    %559 = vmatprep.subr.mxu0 0.0
    %560 = vmatpush2.msra.mxu0 0.0
    %561 = vmatprep.subr.mxu0 0.0
    %562 = vmatpush2.msra.mxu0 0.0
    %563 = vmatprep.subr.mxu0 0.0
    %564 = vmatpush2.msra.mxu0 0.0
    %565 = vmatprep.mubr.f32.mxu0 0.0
    %v566 = vand.u32 %v42, 4294901760
    %567 = vmatmul.mubr.f32.gmra.mxu0 %v566
    %v568 = vpop.f32.mrf.mxu0
    %v569 = vadd.f32 %v491, %v568
    %v570 = vpop.f32.mrf.mxu0
    %571 = vdwg.mxu0
    %v572 = vmax.f32 %v569, 0.0
    %v573 = vld [vmem:[#allocation2] sm:$0xff]
    %v574 = vld [vmem:[#allocation2 + $0x8] sm:$0xff]
    %v575 = vld [vmem:[#allocation2 + $0x10] sm:$0xff]
    %v576 = vld [vmem:[#allocation2 + $0x18] sm:$0xff]
    %v577 = vld [vmem:[#allocation2 + $0x20] sm:$0xff]
    %v578 = vld [vmem:[#allocation2 + $0x28] sm:$0xff]
    %v579 = vld [vmem:[#allocation2 + $0x30] sm:$0x7f]
    %vm580 = vcmask 449536
    %v582 = vsel %vm580, %v572, 0
    %vm584 = vcmask 1046528
    %v586 = vsel %vm584, %v579, 0
    %588 = vmatprep.subr.mxu0 0.0
    %589 = vmatpush1.msra.mxu0 0.0
    %590 = vmatprep.subr.mxu0 0.0
    %591 = vmatpush1.msra.mxu0 0.0
    %592 = vmatprep.subr.mxu0 0.0
    %593 = vmatpush1.msra.mxu0 0.0
    %594 = vmatprep.subr.mxu0 0.0
    %595 = vmatpush1.msra.mxu0 0.0
    %596 = vmatprep.subr.mxu0 0.0
    %597 = vmatpush1.msra.mxu0 0.0
    %598 = vmatprep.subr.mxu0 0.0
    %599 = vmatpush1.msra.mxu0 0.0
    %600 = vmatprep.subr.mxu0 0.0
    %601 = vmatpush1.msra.mxu0 0.0
    %602 = vmatprep.subr.mxu0 0.0
    %603 = vmatpush1.msra.mxu0 0.0
    %604 = vmatprep.subr.mxu0 0.0
    %605 = vmatpush1.msra.mxu0 0.0
    %606 = vmatprep.subr.mxu0 0.0
    %v607 = vand.u32 %v586, 4294901760
    %608 = vmatpush1.msra.mxu0 %v607
    %609 = vmatprep.subr.mxu0 0.0
    %v610 = vand.u32 %v578, 4294901760
    %611 = vmatpush1.msra.mxu0 %v610
    %612 = vmatprep.subr.mxu0 0.0
    %v613 = vand.u32 %v577, 4294901760
    %614 = vmatpush1.msra.mxu0 %v613
    %615 = vmatprep.subr.mxu0 0.0
    %v616 = vand.u32 %v576, 4294901760
    %617 = vmatpush1.msra.mxu0 %v616
    %618 = vmatprep.subr.mxu0 0.0
    %v619 = vand.u32 %v575, 4294901760
    %620 = vmatpush1.msra.mxu0 %v619
    %621 = vmatprep.subr.mxu0 0.0
    %v622 = vand.u32 %v574, 4294901760
    %623 = vmatpush1.msra.mxu0 %v622
    %624 = vmatprep.subr.mxu0 0.0
    %v625 = vand.u32 %v573, 4294901760
    %626 = vmatpush1.msra.mxu0 %v625
    %627 = vmatprep.subr.mxu0 0.0
    %628 = vmatpush2.msra.mxu0 0.0
    %629 = vmatprep.subr.mxu0 0.0
    %630 = vmatpush2.msra.mxu0 0.0
    %631 = vmatprep.subr.mxu0 0.0
    %632 = vmatpush2.msra.mxu0 0.0
    %633 = vmatprep.subr.mxu0 0.0
    %634 = vmatpush2.msra.mxu0 0.0
    %635 = vmatprep.subr.mxu0 0.0
    %636 = vmatpush2.msra.mxu0 0.0
    %637 = vmatprep.subr.mxu0 0.0
    %638 = vmatpush2.msra.mxu0 0.0
    %639 = vmatprep.subr.mxu0 0.0
    %640 = vmatpush2.msra.mxu0 0.0
    %641 = vmatprep.subr.mxu0 0.0
    %642 = vmatpush2.msra.mxu0 0.0
    %643 = vmatprep.subr.mxu0 0.0
    %644 = vmatpush2.msra.mxu0 0.0
    %645 = vmatprep.subr.mxu0 0.0
    %646 = vmatpush2.msra.mxu0 0.0
    %647 = vmatprep.subr.mxu0 0.0
    %648 = vmatpush2.msra.mxu0 0.0
    %649 = vmatprep.subr.mxu0 0.0
    %650 = vmatpush2.msra.mxu0 0.0
    %651 = vmatprep.subr.mxu0 0.0
    %652 = vmatpush2.msra.mxu0 0.0
    %653 = vmatprep.subr.mxu0 0.0
    %654 = vmatpush2.msra.mxu0 0.0
    %655 = vmatprep.subr.mxu0 0.0
    %656 = vmatpush2.msra.mxu0 0.0
    %657 = vmatprep.subr.mxu0 0.0
    %658 = vmatpush2.msra.mxu0 0.0
    %659 = vmatprep.mubr.f32.mxu0 0.0
    %v660 = vand.u32 %v582, 4294901760
    %v661 = vsub.f32 %v582, %v660
    %v662 = vand.u32 %v661, 4294901760
    %v663 = vsub.f32 %v661, %v662
    %v664 = vand.u32 %v663, 4294901760
    %665 = vmatmul.mubr.f32.gmra.mxu0 %v664
    %v666 = vpop.f32.mrf.mxu0
    %v667 = vadd.f32 0.0, %v666
    %v668 = vpop.f32.mrf.mxu0
    %669 = vdwg.mxu0
    %670 = vmatprep.subr.mxu0 0.0
    %671 = vmatpush1.msra.mxu0 0.0
    %672 = vmatprep.subr.mxu0 0.0
    %673 = vmatpush1.msra.mxu0 0.0
    %674 = vmatprep.subr.mxu0 0.0
    %675 = vmatpush1.msra.mxu0 0.0
    %676 = vmatprep.subr.mxu0 0.0
    %677 = vmatpush1.msra.mxu0 0.0
    %678 = vmatprep.subr.mxu0 0.0
    %679 = vmatpush1.msra.mxu0 0.0
    %680 = vmatprep.subr.mxu0 0.0
    %681 = vmatpush1.msra.mxu0 0.0
    %682 = vmatprep.subr.mxu0 0.0
    %683 = vmatpush1.msra.mxu0 0.0
    %684 = vmatprep.subr.mxu0 0.0
    %685 = vmatpush1.msra.mxu0 0.0
    %686 = vmatprep.subr.mxu0 0.0
    %687 = vmatpush1.msra.mxu0 0.0
    %688 = vmatprep.subr.mxu0 0.0
    %v689 = vand.u32 %v586, 4294901760
    %v690 = vsub.f32 %v586, %v689
    %v691 = vand.u32 %v690, 4294901760
    %v692 = vsub.f32 %v690, %v691
    %v693 = vand.u32 %v692, 4294901760
    %694 = vmatpush1.msra.mxu0 %v693
    %695 = vmatprep.subr.mxu0 0.0
    %v696 = vand.u32 %v578, 4294901760
    %v697 = vsub.f32 %v578, %v696
    %v698 = vand.u32 %v697, 4294901760
    %v699 = vsub.f32 %v697, %v698
    %v700 = vand.u32 %v699, 4294901760
    %701 = vmatpush1.msra.mxu0 %v700
    %702 = vmatprep.subr.mxu0 0.0
    %v703 = vand.u32 %v577, 4294901760
    %v704 = vsub.f32 %v577, %v703
    %v705 = vand.u32 %v704, 4294901760
    %v706 = vsub.f32 %v704, %v705
    %v707 = vand.u32 %v706, 4294901760
    %708 = vmatpush1.msra.mxu0 %v707
    %709 = vmatprep.subr.mxu0 0.0
    %v710 = vand.u32 %v576, 4294901760
    %v711 = vsub.f32 %v576, %v710
    %v712 = vand.u32 %v711, 4294901760
    %v713 = vsub.f32 %v711, %v712
    %v714 = vand.u32 %v713, 4294901760
    %715 = vmatpush1.msra.mxu0 %v714
    %716 = vmatprep.subr.mxu0 0.0
    %v717 = vand.u32 %v575, 4294901760
    %v718 = vsub.f32 %v575, %v717
    %v719 = vand.u32 %v718, 4294901760
    %v720 = vsub.f32 %v718, %v719
    %v721 = vand.u32 %v720, 4294901760
    %722 = vmatpush1.msra.mxu0 %v721
    %723 = vmatprep.subr.mxu0 0.0
    %v724 = vand.u32 %v574, 4294901760
    %v725 = vsub.f32 %v574, %v724
    %v726 = vand.u32 %v725, 4294901760
    %v727 = vsub.f32 %v725, %v726
    %v728 = vand.u32 %v727, 4294901760
    %729 = vmatpush1.msra.mxu0 %v728
    %730 = vmatprep.subr.mxu0 0.0
    %v731 = vand.u32 %v573, 4294901760
    %v732 = vsub.f32 %v573, %v731
    %v733 = vand.u32 %v732, 4294901760
    %v734 = vsub.f32 %v732, %v733
    %v735 = vand.u32 %v734, 4294901760
    %736 = vmatpush1.msra.mxu0 %v735
    %737 = vmatprep.subr.mxu0 0.0
    %738 = vmatpush2.msra.mxu0 0.0
    %739 = vmatprep.subr.mxu0 0.0
    %740 = vmatpush2.msra.mxu0 0.0
    %741 = vmatprep.subr.mxu0 0.0
    %742 = vmatpush2.msra.mxu0 0.0
    %743 = vmatprep.subr.mxu0 0.0
    %744 = vmatpush2.msra.mxu0 0.0
    %745 = vmatprep.subr.mxu0 0.0
    %746 = vmatpush2.msra.mxu0 0.0
    %747 = vmatprep.subr.mxu0 0.0
    %748 = vmatpush2.msra.mxu0 0.0
    %749 = vmatprep.subr.mxu0 0.0
    %750 = vmatpush2.msra.mxu0 0.0
    %751 = vmatprep.subr.mxu0 0.0
    %752 = vmatpush2.msra.mxu0 0.0
    %753 = vmatprep.subr.mxu0 0.0
    %754 = vmatpush2.msra.mxu0 0.0
    %755 = vmatprep.subr.mxu0 0.0
    %756 = vmatpush2.msra.mxu0 0.0
    %757 = vmatprep.subr.mxu0 0.0
    %758 = vmatpush2.msra.mxu0 0.0
    %759 = vmatprep.subr.mxu0 0.0
    %760 = vmatpush2.msra.mxu0 0.0
    %761 = vmatprep.subr.mxu0 0.0
    %762 = vmatpush2.msra.mxu0 0.0
    %763 = vmatprep.subr.mxu0 0.0
    %764 = vmatpush2.msra.mxu0 0.0
    %765 = vmatprep.subr.mxu0 0.0
    %766 = vmatpush2.msra.mxu0 0.0
    %767 = vmatprep.subr.mxu0 0.0
    %768 = vmatpush2.msra.mxu0 0.0
    %769 = vmatprep.mubr.f32.mxu0 0.0
    %v770 = vand.u32 %v582, 4294901760
    %771 = vmatmul.mubr.f32.gmra.mxu0 %v770
    %v772 = vpop.f32.mrf.mxu0
    %v773 = vadd.f32 %v667, %v772
    %v774 = vpop.f32.mrf.mxu0
    %775 = vdwg.mxu0
    %776 = vmatprep.subr.mxu0 0.0
    %777 = vmatpush1.msra.mxu0 0.0
    %778 = vmatprep.subr.mxu0 0.0
    %779 = vmatpush1.msra.mxu0 0.0
    %780 = vmatprep.subr.mxu0 0.0
    %781 = vmatpush1.msra.mxu0 0.0
    %782 = vmatprep.subr.mxu0 0.0
    %783 = vmatpush1.msra.mxu0 0.0
    %784 = vmatprep.subr.mxu0 0.0
    %785 = vmatpush1.msra.mxu0 0.0
    %786 = vmatprep.subr.mxu0 0.0
    %787 = vmatpush1.msra.mxu0 0.0
    %788 = vmatprep.subr.mxu0 0.0
    %789 = vmatpush1.msra.mxu0 0.0
    %790 = vmatprep.subr.mxu0 0.0
    %791 = vmatpush1.msra.mxu0 0.0
    %792 = vmatprep.subr.mxu0 0.0
    %793 = vmatpush1.msra.mxu0 0.0
    %794 = vmatprep.subr.mxu0 0.0
    %v795 = vand.u32 %v586, 4294901760
    %v796 = vsub.f32 %v586, %v795
    %797 = vmatpush1.msra.mxu0 %v796
    %798 = vmatprep.subr.mxu0 0.0
    %v799 = vand.u32 %v578, 4294901760
    %v800 = vsub.f32 %v578, %v799
    %801 = vmatpush1.msra.mxu0 %v800
    %802 = vmatprep.subr.mxu0 0.0
    %v803 = vand.u32 %v577, 4294901760
    %v804 = vsub.f32 %v577, %v803
    %805 = vmatpush1.msra.mxu0 %v804
    %806 = vmatprep.subr.mxu0 0.0
    %v807 = vand.u32 %v576, 4294901760
    %v808 = vsub.f32 %v576, %v807
    %809 = vmatpush1.msra.mxu0 %v808
    %810 = vmatprep.subr.mxu0 0.0
    %v811 = vand.u32 %v575, 4294901760
    %v812 = vsub.f32 %v575, %v811
    %813 = vmatpush1.msra.mxu0 %v812
    %814 = vmatprep.subr.mxu0 0.0
    %v815 = vand.u32 %v574, 4294901760
    %v816 = vsub.f32 %v574, %v815
    %817 = vmatpush1.msra.mxu0 %v816
    %818 = vmatprep.subr.mxu0 0.0
    %v819 = vand.u32 %v573, 4294901760
    %v820 = vsub.f32 %v573, %v819
    %821 = vmatpush1.msra.mxu0 %v820
    %822 = vmatprep.subr.mxu0 0.0
    %823 = vmatpush2.msra.mxu0 0.0
    %824 = vmatprep.subr.mxu0 0.0
    %825 = vmatpush2.msra.mxu0 0.0
    %826 = vmatprep.subr.mxu0 0.0
    %827 = vmatpush2.msra.mxu0 0.0
    %828 = vmatprep.subr.mxu0 0.0
    %829 = vmatpush2.msra.mxu0 0.0
    %830 = vmatprep.subr.mxu0 0.0
    %831 = vmatpush2.msra.mxu0 0.0
    %832 = vmatprep.subr.mxu0 0.0
    %833 = vmatpush2.msra.mxu0 0.0
    %834 = vmatprep.subr.mxu0 0.0
    %835 = vmatpush2.msra.mxu0 0.0
    %836 = vmatprep.subr.mxu0 0.0
    %837 = vmatpush2.msra.mxu0 0.0
    %838 = vmatprep.subr.mxu0 0.0
    %839 = vmatpush2.msra.mxu0 0.0
    %840 = vmatprep.subr.mxu0 0.0
    %841 = vmatpush2.msra.mxu0 0.0
    %842 = vmatprep.subr.mxu0 0.0
    %843 = vmatpush2.msra.mxu0 0.0
    %844 = vmatprep.subr.mxu0 0.0
    %845 = vmatpush2.msra.mxu0 0.0
    %846 = vmatprep.subr.mxu0 0.0
    %847 = vmatpush2.msra.mxu0 0.0
    %848 = vmatprep.subr.mxu0 0.0
    %849 = vmatpush2.msra.mxu0 0.0
    %850 = vmatprep.subr.mxu0 0.0
    %851 = vmatpush2.msra.mxu0 0.0
    %852 = vmatprep.subr.mxu0 0.0
    %853 = vmatpush2.msra.mxu0 0.0
    %854 = vmatprep.mubr.f32.mxu0 0.0
    %v855 = vand.u32 %v582, 4294901760
    %v856 = vsub.f32 %v582, %v855
    %857 = vmatmul.mubr.f32.gmra.mxu0 %v856
    %v858 = vpop.f32.mrf.mxu0
    %v859 = vadd.f32 %v773, %v858
    %v860 = vpop.f32.mrf.mxu0
    %861 = vdwg.mxu0
    %862 = vmatprep.subr.mxu0 0.0
    %863 = vmatpush1.msra.mxu0 0.0
    %864 = vmatprep.subr.mxu0 0.0
    %865 = vmatpush1.msra.mxu0 0.0
    %866 = vmatprep.subr.mxu0 0.0
    %867 = vmatpush1.msra.mxu0 0.0
    %868 = vmatprep.subr.mxu0 0.0
    %869 = vmatpush1.msra.mxu0 0.0
    %870 = vmatprep.subr.mxu0 0.0
    %871 = vmatpush1.msra.mxu0 0.0
    %872 = vmatprep.subr.mxu0 0.0
    %873 = vmatpush1.msra.mxu0 0.0
    %874 = vmatprep.subr.mxu0 0.0
    %875 = vmatpush1.msra.mxu0 0.0
    %876 = vmatprep.subr.mxu0 0.0
    %877 = vmatpush1.msra.mxu0 0.0
    %878 = vmatprep.subr.mxu0 0.0
    %879 = vmatpush1.msra.mxu0 0.0
    %880 = vmatprep.subr.mxu0 0.0
    %v881 = vand.u32 %v586, 4294901760
    %882 = vmatpush1.msra.mxu0 %v881
    %883 = vmatprep.subr.mxu0 0.0
    %v884 = vand.u32 %v578, 4294901760
    %885 = vmatpush1.msra.mxu0 %v884
    %886 = vmatprep.subr.mxu0 0.0
    %v887 = vand.u32 %v577, 4294901760
    %888 = vmatpush1.msra.mxu0 %v887
    %889 = vmatprep.subr.mxu0 0.0
    %v890 = vand.u32 %v576, 4294901760
    %891 = vmatpush1.msra.mxu0 %v890
    %892 = vmatprep.subr.mxu0 0.0
    %v893 = vand.u32 %v575, 4294901760
    %894 = vmatpush1.msra.mxu0 %v893
    %895 = vmatprep.subr.mxu0 0.0
    %v896 = vand.u32 %v574, 4294901760
    %897 = vmatpush1.msra.mxu0 %v896
    %898 = vmatprep.subr.mxu0 0.0
    %v899 = vand.u32 %v573, 4294901760
    %900 = vmatpush1.msra.mxu0 %v899
    %901 = vmatprep.subr.mxu0 0.0
    %902 = vmatpush2.msra.mxu0 0.0
    %903 = vmatprep.subr.mxu0 0.0
    %904 = vmatpush2.msra.mxu0 0.0
    %905 = vmatprep.subr.mxu0 0.0
    %906 = vmatpush2.msra.mxu0 0.0
    %907 = vmatprep.subr.mxu0 0.0
    %908 = vmatpush2.msra.mxu0 0.0
    %909 = vmatprep.subr.mxu0 0.0
    %910 = vmatpush2.msra.mxu0 0.0
    %911 = vmatprep.subr.mxu0 0.0
    %912 = vmatpush2.msra.mxu0 0.0
    %913 = vmatprep.subr.mxu0 0.0
    %914 = vmatpush2.msra.mxu0 0.0
    %915 = vmatprep.subr.mxu0 0.0
    %916 = vmatpush2.msra.mxu0 0.0
    %917 = vmatprep.subr.mxu0 0.0
    %918 = vmatpush2.msra.mxu0 0.0
    %919 = vmatprep.subr.mxu0 0.0
    %920 = vmatpush2.msra.mxu0 0.0
    %921 = vmatprep.subr.mxu0 0.0
    %922 = vmatpush2.msra.mxu0 0.0
    %923 = vmatprep.subr.mxu0 0.0
    %924 = vmatpush2.msra.mxu0 0.0
    %925 = vmatprep.subr.mxu0 0.0
    %926 = vmatpush2.msra.mxu0 0.0
    %927 = vmatprep.subr.mxu0 0.0
    %928 = vmatpush2.msra.mxu0 0.0
    %929 = vmatprep.subr.mxu0 0.0
    %930 = vmatpush2.msra.mxu0 0.0
    %931 = vmatprep.subr.mxu0 0.0
    %932 = vmatpush2.msra.mxu0 0.0
    %933 = vmatprep.mubr.f32.mxu0 0.0
    %v934 = vand.u32 %v582, 4294901760
    %v935 = vsub.f32 %v582, %v934
    %v936 = vand.u32 %v935, 4294901760
    %937 = vmatmul.mubr.f32.gmra.mxu0 %v936
    %v938 = vpop.f32.mrf.mxu0
    %v939 = vadd.f32 %v859, %v938
    %v940 = vpop.f32.mrf.mxu0
    %941 = vdwg.mxu0
    %942 = vmatprep.subr.mxu0 0.0
    %943 = vmatpush1.msra.mxu0 0.0
    %944 = vmatprep.subr.mxu0 0.0
    %945 = vmatpush1.msra.mxu0 0.0
    %946 = vmatprep.subr.mxu0 0.0
    %947 = vmatpush1.msra.mxu0 0.0
    %948 = vmatprep.subr.mxu0 0.0
    %949 = vmatpush1.msra.mxu0 0.0
    %950 = vmatprep.subr.mxu0 0.0
    %951 = vmatpush1.msra.mxu0 0.0
    %952 = vmatprep.subr.mxu0 0.0
    %953 = vmatpush1.msra.mxu0 0.0
    %954 = vmatprep.subr.mxu0 0.0
    %955 = vmatpush1.msra.mxu0 0.0
    %956 = vmatprep.subr.mxu0 0.0
    %957 = vmatpush1.msra.mxu0 0.0
    %958 = vmatprep.subr.mxu0 0.0
    %959 = vmatpush1.msra.mxu0 0.0
    %960 = vmatprep.subr.mxu0 0.0
    %v961 = vand.u32 %v586, 4294901760
    %v962 = vsub.f32 %v586, %v961
    %v963 = vand.u32 %v962, 4294901760
    %964 = vmatpush1.msra.mxu0 %v963
    %965 = vmatprep.subr.mxu0 0.0
    %v966 = vand.u32 %v578, 4294901760
    %v967 = vsub.f32 %v578, %v966
    %v968 = vand.u32 %v967, 4294901760
    %969 = vmatpush1.msra.mxu0 %v968
    %970 = vmatprep.subr.mxu0 0.0
    %v971 = vand.u32 %v577, 4294901760
    %v972 = vsub.f32 %v577, %v971
    %v973 = vand.u32 %v972, 4294901760
    %974 = vmatpush1.msra.mxu0 %v973
    %975 = vmatprep.subr.mxu0 0.0
    %v976 = vand.u32 %v576, 4294901760
    %v977 = vsub.f32 %v576, %v976
    %v978 = vand.u32 %v977, 4294901760
    %979 = vmatpush1.msra.mxu0 %v978
    %980 = vmatprep.subr.mxu0 0.0
    %v981 = vand.u32 %v575, 4294901760
    %v982 = vsub.f32 %v575, %v981
    %v983 = vand.u32 %v982, 4294901760
    %984 = vmatpush1.msra.mxu0 %v983
    %985 = vmatprep.subr.mxu0 0.0
    %v986 = vand.u32 %v574, 4294901760
    %v987 = vsub.f32 %v574, %v986
    %v988 = vand.u32 %v987, 4294901760
    %989 = vmatpush1.msra.mxu0 %v988
    %990 = vmatprep.subr.mxu0 0.0
    %v991 = vand.u32 %v573, 4294901760
    %v992 = vsub.f32 %v573, %v991
    %v993 = vand.u32 %v992, 4294901760
    %994 = vmatpush1.msra.mxu0 %v993
    %995 = vmatprep.subr.mxu0 0.0
    %996 = vmatpush2.msra.mxu0 0.0
    %997 = vmatprep.subr.mxu0 0.0
    %998 = vmatpush2.msra.mxu0 0.0
    %999 = vmatprep.subr.mxu0 0.0
    %1000 = vmatpush2.msra.mxu0 0.0
    %1001 = vmatprep.subr.mxu0 0.0
    %1002 = vmatpush2.msra.mxu0 0.0
    %1003 = vmatprep.subr.mxu0 0.0
    %1004 = vmatpush2.msra.mxu0 0.0
    %1005 = vmatprep.subr.mxu0 0.0
    %1006 = vmatpush2.msra.mxu0 0.0
    %1007 = vmatprep.subr.mxu0 0.0
    %1008 = vmatpush2.msra.mxu0 0.0
    %1009 = vmatprep.subr.mxu0 0.0
    %1010 = vmatpush2.msra.mxu0 0.0
    %1011 = vmatprep.subr.mxu0 0.0
    %1012 = vmatpush2.msra.mxu0 0.0
    %1013 = vmatprep.subr.mxu0 0.0
    %1014 = vmatpush2.msra.mxu0 0.0
    %1015 = vmatprep.subr.mxu0 0.0
    %1016 = vmatpush2.msra.mxu0 0.0
    %1017 = vmatprep.subr.mxu0 0.0
    %1018 = vmatpush2.msra.mxu0 0.0
    %1019 = vmatprep.subr.mxu0 0.0
    %1020 = vmatpush2.msra.mxu0 0.0
    %1021 = vmatprep.subr.mxu0 0.0
    %1022 = vmatpush2.msra.mxu0 0.0
    %1023 = vmatprep.subr.mxu0 0.0
    %1024 = vmatpush2.msra.mxu0 0.0
    %1025 = vmatprep.subr.mxu0 0.0
    %1026 = vmatpush2.msra.mxu0 0.0
    %1027 = vmatprep.mubr.f32.mxu0 0.0
    %v1028 = vand.u32 %v582, 4294901760
    %1029 = vmatmul.mubr.f32.gmra.mxu0 %v1028
    %v1030 = vpop.f32.mrf.mxu0
    %v1031 = vadd.f32 %v939, %v1030
    %v1032 = vpop.f32.mrf.mxu0
    %1033 = vdwg.mxu0
    %1034 = vmatprep.subr.mxu0 0.0
    %1035 = vmatpush1.msra.mxu0 0.0
    %1036 = vmatprep.subr.mxu0 0.0
    %1037 = vmatpush1.msra.mxu0 0.0
    %1038 = vmatprep.subr.mxu0 0.0
    %1039 = vmatpush1.msra.mxu0 0.0
    %1040 = vmatprep.subr.mxu0 0.0
    %1041 = vmatpush1.msra.mxu0 0.0
    %1042 = vmatprep.subr.mxu0 0.0
    %1043 = vmatpush1.msra.mxu0 0.0
    %1044 = vmatprep.subr.mxu0 0.0
    %1045 = vmatpush1.msra.mxu0 0.0
    %1046 = vmatprep.subr.mxu0 0.0
    %1047 = vmatpush1.msra.mxu0 0.0
    %1048 = vmatprep.subr.mxu0 0.0
    %1049 = vmatpush1.msra.mxu0 0.0
    %1050 = vmatprep.subr.mxu0 0.0
    %1051 = vmatpush1.msra.mxu0 0.0
    %1052 = vmatprep.subr.mxu0 0.0
    %v1053 = vand.u32 %v586, 4294901760
    %1054 = vmatpush1.msra.mxu0 %v1053
    %1055 = vmatprep.subr.mxu0 0.0
    %v1056 = vand.u32 %v578, 4294901760
    %1057 = vmatpush1.msra.mxu0 %v1056
    %1058 = vmatprep.subr.mxu0 0.0
    %v1059 = vand.u32 %v577, 4294901760
    %1060 = vmatpush1.msra.mxu0 %v1059
    %1061 = vmatprep.subr.mxu0 0.0
    %v1062 = vand.u32 %v576, 4294901760
    %1063 = vmatpush1.msra.mxu0 %v1062
    %1064 = vmatprep.subr.mxu0 0.0
    %v1065 = vand.u32 %v575, 4294901760
    %1066 = vmatpush1.msra.mxu0 %v1065
    %1067 = vmatprep.subr.mxu0 0.0
    %v1068 = vand.u32 %v574, 4294901760
    %1069 = vmatpush1.msra.mxu0 %v1068
    %1070 = vmatprep.subr.mxu0 0.0
    %v1071 = vand.u32 %v573, 4294901760
    %1072 = vmatpush1.msra.mxu0 %v1071
    %1073 = vmatprep.subr.mxu0 0.0
    %1074 = vmatpush2.msra.mxu0 0.0
    %1075 = vmatprep.subr.mxu0 0.0
    %1076 = vmatpush2.msra.mxu0 0.0
    %1077 = vmatprep.subr.mxu0 0.0
    %1078 = vmatpush2.msra.mxu0 0.0
    %1079 = vmatprep.subr.mxu0 0.0
    %1080 = vmatpush2.msra.mxu0 0.0
    %1081 = vmatprep.subr.mxu0 0.0
    %1082 = vmatpush2.msra.mxu0 0.0
    %1083 = vmatprep.subr.mxu0 0.0
    %1084 = vmatpush2.msra.mxu0 0.0
    %1085 = vmatprep.subr.mxu0 0.0
    %1086 = vmatpush2.msra.mxu0 0.0
    %1087 = vmatprep.subr.mxu0 0.0
    %1088 = vmatpush2.msra.mxu0 0.0
    %1089 = vmatprep.subr.mxu0 0.0
    %1090 = vmatpush2.msra.mxu0 0.0
    %1091 = vmatprep.subr.mxu0 0.0
    %1092 = vmatpush2.msra.mxu0 0.0
    %1093 = vmatprep.subr.mxu0 0.0
    %1094 = vmatpush2.msra.mxu0 0.0
    %1095 = vmatprep.subr.mxu0 0.0
    %1096 = vmatpush2.msra.mxu0 0.0
    %1097 = vmatprep.subr.mxu0 0.0
    %1098 = vmatpush2.msra.mxu0 0.0
    %1099 = vmatprep.subr.mxu0 0.0
    %1100 = vmatpush2.msra.mxu0 0.0
    %1101 = vmatprep.subr.mxu0 0.0
    %1102 = vmatpush2.msra.mxu0 0.0
    %1103 = vmatprep.subr.mxu0 0.0
    %1104 = vmatpush2.msra.mxu0 0.0
    %1105 = vmatprep.mubr.f32.mxu0 0.0
    %v1106 = vand.u32 %v582, 4294901760
    %1107 = vmatmul.mubr.f32.gmra.mxu0 %v1106
    %v1108 = vpop.f32.mrf.mxu0
    %v1109 = vadd.f32 %v1031, %v1108
    %v1110 = vpop.f32.mrf.mxu0
    %1111 = vdwg.mxu0
    %v1112 = vmax.f32 %v1109, 0.0
    %v1113 = vld [vmem:[%s3] sm:$0xff]
    %v1114 = vld [vmem:[%s3 + $0x8] sm:$0xff]
    %v1115 = vld [vmem:[%s3 + $0x10] sm:$0xff]
    %v1116 = vld [vmem:[%s3 + $0x18] sm:$0xff]
    %v1117 = vld [vmem:[%s3 + $0x20] sm:$0xff]
    %v1118 = vld [vmem:[%s3 + $0x28] sm:$0xff]
    %v1119 = vld [vmem:[%s3 + $0x30] sm:$0x7f]
    %v1121 = vsel %vm580, %v1112, 0
    %v1124 = vsel %vm584, %v1119, 0
    %1126 = vmatprep.subr.mxu0 0.0
    %1127 = vmatpush1.msra.mxu0 0.0
    %1128 = vmatprep.subr.mxu0 0.0
    %1129 = vmatpush1.msra.mxu0 0.0
    %1130 = vmatprep.subr.mxu0 0.0
    %1131 = vmatpush1.msra.mxu0 0.0
    %1132 = vmatprep.subr.mxu0 0.0
    %1133 = vmatpush1.msra.mxu0 0.0
    %1134 = vmatprep.subr.mxu0 0.0
    %1135 = vmatpush1.msra.mxu0 0.0
    %1136 = vmatprep.subr.mxu0 0.0
    %1137 = vmatpush1.msra.mxu0 0.0
    %1138 = vmatprep.subr.mxu0 0.0
    %1139 = vmatpush1.msra.mxu0 0.0
    %1140 = vmatprep.subr.mxu0 0.0
    %1141 = vmatpush1.msra.mxu0 0.0
    %1142 = vmatprep.subr.mxu0 0.0
    %1143 = vmatpush1.msra.mxu0 0.0
    %1144 = vmatprep.subr.mxu0 0.0
    %v1145 = vand.u32 %v1124, 4294901760
    %1146 = vmatpush1.msra.mxu0 %v1145
    %1147 = vmatprep.subr.mxu0 0.0
    %v1148 = vand.u32 %v1118, 4294901760
    %1149 = vmatpush1.msra.mxu0 %v1148
    %1150 = vmatprep.subr.mxu0 0.0
    %v1151 = vand.u32 %v1117, 4294901760
    %1152 = vmatpush1.msra.mxu0 %v1151
    %1153 = vmatprep.subr.mxu0 0.0
    %v1154 = vand.u32 %v1116, 4294901760
    %1155 = vmatpush1.msra.mxu0 %v1154
    %1156 = vmatprep.subr.mxu0 0.0
    %v1157 = vand.u32 %v1115, 4294901760
    %1158 = vmatpush1.msra.mxu0 %v1157
    %1159 = vmatprep.subr.mxu0 0.0
    %v1160 = vand.u32 %v1114, 4294901760
    %1161 = vmatpush1.msra.mxu0 %v1160
    %1162 = vmatprep.subr.mxu0 0.0
    %v1163 = vand.u32 %v1113, 4294901760
    %1164 = vmatpush1.msra.mxu0 %v1163
    %1165 = vmatprep.subr.mxu0 0.0
    %1166 = vmatpush2.msra.mxu0 0.0
    %1167 = vmatprep.subr.mxu0 0.0
    %1168 = vmatpush2.msra.mxu0 0.0
    %1169 = vmatprep.subr.mxu0 0.0
    %1170 = vmatpush2.msra.mxu0 0.0
    %1171 = vmatprep.subr.mxu0 0.0
    %1172 = vmatpush2.msra.mxu0 0.0
    %1173 = vmatprep.subr.mxu0 0.0
    %1174 = vmatpush2.msra.mxu0 0.0
    %1175 = vmatprep.subr.mxu0 0.0
    %1176 = vmatpush2.msra.mxu0 0.0
    %1177 = vmatprep.subr.mxu0 0.0
    %1178 = vmatpush2.msra.mxu0 0.0
    %1179 = vmatprep.subr.mxu0 0.0
    %1180 = vmatpush2.msra.mxu0 0.0
    %1181 = vmatprep.subr.mxu0 0.0
    %1182 = vmatpush2.msra.mxu0 0.0
    %1183 = vmatprep.subr.mxu0 0.0
    %1184 = vmatpush2.msra.mxu0 0.0
    %1185 = vmatprep.subr.mxu0 0.0
    %1186 = vmatpush2.msra.mxu0 0.0
    %1187 = vmatprep.subr.mxu0 0.0
    %1188 = vmatpush2.msra.mxu0 0.0
    %1189 = vmatprep.subr.mxu0 0.0
    %1190 = vmatpush2.msra.mxu0 0.0
    %1191 = vmatprep.subr.mxu0 0.0
    %1192 = vmatpush2.msra.mxu0 0.0
    %1193 = vmatprep.subr.mxu0 0.0
    %1194 = vmatpush2.msra.mxu0 0.0
    %1195 = vmatprep.subr.mxu0 0.0
    %1196 = vmatpush2.msra.mxu0 0.0
    %1197 = vmatprep.mubr.f32.mxu0 0.0
    %v1198 = vand.u32 %v1121, 4294901760
    %v1199 = vsub.f32 %v1121, %v1198
    %v1200 = vand.u32 %v1199, 4294901760
    %v1201 = vsub.f32 %v1199, %v1200
    %v1202 = vand.u32 %v1201, 4294901760
    %1203 = vmatmul.mubr.f32.gmra.mxu0 %v1202
    %v1204 = vpop.f32.mrf.mxu0
    %v1205 = vadd.f32 0.0, %v1204
    %v1206 = vpop.f32.mrf.mxu0
    %1207 = vdwg.mxu0
    %1208 = vmatprep.subr.mxu0 0.0
    %1209 = vmatpush1.msra.mxu0 0.0
    %1210 = vmatprep.subr.mxu0 0.0
    %1211 = vmatpush1.msra.mxu0 0.0
    %1212 = vmatprep.subr.mxu0 0.0
    %1213 = vmatpush1.msra.mxu0 0.0
    %1214 = vmatprep.subr.mxu0 0.0
    %1215 = vmatpush1.msra.mxu0 0.0
    %1216 = vmatprep.subr.mxu0 0.0
    %1217 = vmatpush1.msra.mxu0 0.0
    %1218 = vmatprep.subr.mxu0 0.0
    %1219 = vmatpush1.msra.mxu0 0.0
    %1220 = vmatprep.subr.mxu0 0.0
    %1221 = vmatpush1.msra.mxu0 0.0
    %1222 = vmatprep.subr.mxu0 0.0
    %1223 = vmatpush1.msra.mxu0 0.0
    %1224 = vmatprep.subr.mxu0 0.0
    %1225 = vmatpush1.msra.mxu0 0.0
    %1226 = vmatprep.subr.mxu0 0.0
    %v1227 = vand.u32 %v1124, 4294901760
    %v1228 = vsub.f32 %v1124, %v1227
    %v1229 = vand.u32 %v1228, 4294901760
    %v1230 = vsub.f32 %v1228, %v1229
    %v1231 = vand.u32 %v1230, 4294901760
    %1232 = vmatpush1.msra.mxu0 %v1231
    %1233 = vmatprep.subr.mxu0 0.0
    %v1234 = vand.u32 %v1118, 4294901760
    %v1235 = vsub.f32 %v1118, %v1234
    %v1236 = vand.u32 %v1235, 4294901760
    %v1237 = vsub.f32 %v1235, %v1236
    %v1238 = vand.u32 %v1237, 4294901760
    %1239 = vmatpush1.msra.mxu0 %v1238
    %1240 = vmatprep.subr.mxu0 0.0
    %v1241 = vand.u32 %v1117, 4294901760
    %v1242 = vsub.f32 %v1117, %v1241
    %v1243 = vand.u32 %v1242, 4294901760
    %v1244 = vsub.f32 %v1242, %v1243
    %v1245 = vand.u32 %v1244, 4294901760
    %1246 = vmatpush1.msra.mxu0 %v1245
    %1247 = vmatprep.subr.mxu0 0.0
    %v1248 = vand.u32 %v1116, 4294901760
    %v1249 = vsub.f32 %v1116, %v1248
    %v1250 = vand.u32 %v1249, 4294901760
    %v1251 = vsub.f32 %v1249, %v1250
    %v1252 = vand.u32 %v1251, 4294901760
    %1253 = vmatpush1.msra.mxu0 %v1252
    %1254 = vmatprep.subr.mxu0 0.0
    %v1255 = vand.u32 %v1115, 4294901760
    %v1256 = vsub.f32 %v1115, %v1255
    %v1257 = vand.u32 %v1256, 4294901760
    %v1258 = vsub.f32 %v1256, %v1257
    %v1259 = vand.u32 %v1258, 4294901760
    %1260 = vmatpush1.msra.mxu0 %v1259
    %1261 = vmatprep.subr.mxu0 0.0
    %v1262 = vand.u32 %v1114, 4294901760
    %v1263 = vsub.f32 %v1114, %v1262
    %v1264 = vand.u32 %v1263, 4294901760
    %v1265 = vsub.f32 %v1263, %v1264
    %v1266 = vand.u32 %v1265, 4294901760
    %1267 = vmatpush1.msra.mxu0 %v1266
    %1268 = vmatprep.subr.mxu0 0.0
    %v1269 = vand.u32 %v1113, 4294901760
    %v1270 = vsub.f32 %v1113, %v1269
    %v1271 = vand.u32 %v1270, 4294901760
    %v1272 = vsub.f32 %v1270, %v1271
    %v1273 = vand.u32 %v1272, 4294901760
    %1274 = vmatpush1.msra.mxu0 %v1273
    %1275 = vmatprep.subr.mxu0 0.0
    %1276 = vmatpush2.msra.mxu0 0.0
    %1277 = vmatprep.subr.mxu0 0.0
    %1278 = vmatpush2.msra.mxu0 0.0
    %1279 = vmatprep.subr.mxu0 0.0
    %1280 = vmatpush2.msra.mxu0 0.0
    %1281 = vmatprep.subr.mxu0 0.0
    %1282 = vmatpush2.msra.mxu0 0.0
    %1283 = vmatprep.subr.mxu0 0.0
    %1284 = vmatpush2.msra.mxu0 0.0
    %1285 = vmatprep.subr.mxu0 0.0
    %1286 = vmatpush2.msra.mxu0 0.0
    %1287 = vmatprep.subr.mxu0 0.0
    %1288 = vmatpush2.msra.mxu0 0.0
    %1289 = vmatprep.subr.mxu0 0.0
    %1290 = vmatpush2.msra.mxu0 0.0
    %1291 = vmatprep.subr.mxu0 0.0
    %1292 = vmatpush2.msra.mxu0 0.0
    %1293 = vmatprep.subr.mxu0 0.0
    %1294 = vmatpush2.msra.mxu0 0.0
    %1295 = vmatprep.subr.mxu0 0.0
    %1296 = vmatpush2.msra.mxu0 0.0
    %1297 = vmatprep.subr.mxu0 0.0
    %1298 = vmatpush2.msra.mxu0 0.0
    %1299 = vmatprep.subr.mxu0 0.0
    %1300 = vmatpush2.msra.mxu0 0.0
    %1301 = vmatprep.subr.mxu0 0.0
    %1302 = vmatpush2.msra.mxu0 0.0
    %1303 = vmatprep.subr.mxu0 0.0
    %1304 = vmatpush2.msra.mxu0 0.0
    %1305 = vmatprep.subr.mxu0 0.0
    %1306 = vmatpush2.msra.mxu0 0.0
    %1307 = vmatprep.mubr.f32.mxu0 0.0
    %v1308 = vand.u32 %v1121, 4294901760
    %1309 = vmatmul.mubr.f32.gmra.mxu0 %v1308
    %v1310 = vpop.f32.mrf.mxu0
    %v1311 = vadd.f32 %v1205, %v1310
    %v1312 = vpop.f32.mrf.mxu0
    %1313 = vdwg.mxu0
    %1314 = vmatprep.subr.mxu0 0.0
    %1315 = vmatpush1.msra.mxu0 0.0
    %1316 = vmatprep.subr.mxu0 0.0
    %1317 = vmatpush1.msra.mxu0 0.0
    %1318 = vmatprep.subr.mxu0 0.0
    %1319 = vmatpush1.msra.mxu0 0.0
    %1320 = vmatprep.subr.mxu0 0.0
    %1321 = vmatpush1.msra.mxu0 0.0
    %1322 = vmatprep.subr.mxu0 0.0
    %1323 = vmatpush1.msra.mxu0 0.0
    %1324 = vmatprep.subr.mxu0 0.0
    %1325 = vmatpush1.msra.mxu0 0.0
    %1326 = vmatprep.subr.mxu0 0.0
    %1327 = vmatpush1.msra.mxu0 0.0
    %1328 = vmatprep.subr.mxu0 0.0
    %1329 = vmatpush1.msra.mxu0 0.0
    %1330 = vmatprep.subr.mxu0 0.0
    %1331 = vmatpush1.msra.mxu0 0.0
    %1332 = vmatprep.subr.mxu0 0.0
    %v1333 = vand.u32 %v1124, 4294901760
    %v1334 = vsub.f32 %v1124, %v1333
    %1335 = vmatpush1.msra.mxu0 %v1334
    %1336 = vmatprep.subr.mxu0 0.0
    %v1337 = vand.u32 %v1118, 4294901760
    %v1338 = vsub.f32 %v1118, %v1337
    %1339 = vmatpush1.msra.mxu0 %v1338
    %1340 = vmatprep.subr.mxu0 0.0
    %v1341 = vand.u32 %v1117, 4294901760
    %v1342 = vsub.f32 %v1117, %v1341
    %1343 = vmatpush1.msra.mxu0 %v1342
    %1344 = vmatprep.subr.mxu0 0.0
    %v1345 = vand.u32 %v1116, 4294901760
    %v1346 = vsub.f32 %v1116, %v1345
    %1347 = vmatpush1.msra.mxu0 %v1346
    %1348 = vmatprep.subr.mxu0 0.0
    %v1349 = vand.u32 %v1115, 4294901760
    %v1350 = vsub.f32 %v1115, %v1349
    %1351 = vmatpush1.msra.mxu0 %v1350
    %1352 = vmatprep.subr.mxu0 0.0
    %v1353 = vand.u32 %v1114, 4294901760
    %v1354 = vsub.f32 %v1114, %v1353
    %1355 = vmatpush1.msra.mxu0 %v1354
    %1356 = vmatprep.subr.mxu0 0.0
    %v1357 = vand.u32 %v1113, 4294901760
    %v1358 = vsub.f32 %v1113, %v1357
    %1359 = vmatpush1.msra.mxu0 %v1358
    %1360 = vmatprep.subr.mxu0 0.0
    %1361 = vmatpush2.msra.mxu0 0.0
    %1362 = vmatprep.subr.mxu0 0.0
    %1363 = vmatpush2.msra.mxu0 0.0
    %1364 = vmatprep.subr.mxu0 0.0
    %1365 = vmatpush2.msra.mxu0 0.0
    %1366 = vmatprep.subr.mxu0 0.0
    %1367 = vmatpush2.msra.mxu0 0.0
    %1368 = vmatprep.subr.mxu0 0.0
    %1369 = vmatpush2.msra.mxu0 0.0
    %1370 = vmatprep.subr.mxu0 0.0
    %1371 = vmatpush2.msra.mxu0 0.0
    %1372 = vmatprep.subr.mxu0 0.0
    %1373 = vmatpush2.msra.mxu0 0.0
    %1374 = vmatprep.subr.mxu0 0.0
    %1375 = vmatpush2.msra.mxu0 0.0
    %1376 = vmatprep.subr.mxu0 0.0
    %1377 = vmatpush2.msra.mxu0 0.0
    %1378 = vmatprep.subr.mxu0 0.0
    %1379 = vmatpush2.msra.mxu0 0.0
    %1380 = vmatprep.subr.mxu0 0.0
    %1381 = vmatpush2.msra.mxu0 0.0
    %1382 = vmatprep.subr.mxu0 0.0
    %1383 = vmatpush2.msra.mxu0 0.0
    %1384 = vmatprep.subr.mxu0 0.0
    %1385 = vmatpush2.msra.mxu0 0.0
    %1386 = vmatprep.subr.mxu0 0.0
    %1387 = vmatpush2.msra.mxu0 0.0
    %1388 = vmatprep.subr.mxu0 0.0
    %1389 = vmatpush2.msra.mxu0 0.0
    %1390 = vmatprep.subr.mxu0 0.0
    %1391 = vmatpush2.msra.mxu0 0.0
    %1392 = vmatprep.mubr.f32.mxu0 0.0
    %v1393 = vand.u32 %v1121, 4294901760
    %v1394 = vsub.f32 %v1121, %v1393
    %1395 = vmatmul.mubr.f32.gmra.mxu0 %v1394
    %v1396 = vpop.f32.mrf.mxu0
    %v1397 = vadd.f32 %v1311, %v1396
    %v1398 = vpop.f32.mrf.mxu0
    %1399 = vdwg.mxu0
    %1400 = vmatprep.subr.mxu0 0.0
    %1401 = vmatpush1.msra.mxu0 0.0
    %1402 = vmatprep.subr.mxu0 0.0
    %1403 = vmatpush1.msra.mxu0 0.0
    %1404 = vmatprep.subr.mxu0 0.0
    %1405 = vmatpush1.msra.mxu0 0.0
    %1406 = vmatprep.subr.mxu0 0.0
    %1407 = vmatpush1.msra.mxu0 0.0
    %1408 = vmatprep.subr.mxu0 0.0
    %1409 = vmatpush1.msra.mxu0 0.0
    %1410 = vmatprep.subr.mxu0 0.0
    %1411 = vmatpush1.msra.mxu0 0.0
    %1412 = vmatprep.subr.mxu0 0.0
    %1413 = vmatpush1.msra.mxu0 0.0
    %1414 = vmatprep.subr.mxu0 0.0
    %1415 = vmatpush1.msra.mxu0 0.0
    %1416 = vmatprep.subr.mxu0 0.0
    %1417 = vmatpush1.msra.mxu0 0.0
    %1418 = vmatprep.subr.mxu0 0.0
    %v1419 = vand.u32 %v1124, 4294901760
    %1420 = vmatpush1.msra.mxu0 %v1419
    %1421 = vmatprep.subr.mxu0 0.0
    %v1422 = vand.u32 %v1118, 4294901760
    %1423 = vmatpush1.msra.mxu0 %v1422
    %1424 = vmatprep.subr.mxu0 0.0
    %v1425 = vand.u32 %v1117, 4294901760
    %1426 = vmatpush1.msra.mxu0 %v1425
    %1427 = vmatprep.subr.mxu0 0.0
    %v1428 = vand.u32 %v1116, 4294901760
    %1429 = vmatpush1.msra.mxu0 %v1428
    %1430 = vmatprep.subr.mxu0 0.0
    %v1431 = vand.u32 %v1115, 4294901760
    %1432 = vmatpush1.msra.mxu0 %v1431
    %1433 = vmatprep.subr.mxu0 0.0
    %v1434 = vand.u32 %v1114, 4294901760
    %1435 = vmatpush1.msra.mxu0 %v1434
    %1436 = vmatprep.subr.mxu0 0.0
    %v1437 = vand.u32 %v1113, 4294901760
    %1438 = vmatpush1.msra.mxu0 %v1437
    %1439 = vmatprep.subr.mxu0 0.0
    %1440 = vmatpush2.msra.mxu0 0.0
    %1441 = vmatprep.subr.mxu0 0.0
    %1442 = vmatpush2.msra.mxu0 0.0
    %1443 = vmatprep.subr.mxu0 0.0
    %1444 = vmatpush2.msra.mxu0 0.0
    %1445 = vmatprep.subr.mxu0 0.0
    %1446 = vmatpush2.msra.mxu0 0.0
    %1447 = vmatprep.subr.mxu0 0.0
    %1448 = vmatpush2.msra.mxu0 0.0
    %1449 = vmatprep.subr.mxu0 0.0
    %1450 = vmatpush2.msra.mxu0 0.0
    %1451 = vmatprep.subr.mxu0 0.0
    %1452 = vmatpush2.msra.mxu0 0.0
    %1453 = vmatprep.subr.mxu0 0.0
    %1454 = vmatpush2.msra.mxu0 0.0
    %1455 = vmatprep.subr.mxu0 0.0
    %1456 = vmatpush2.msra.mxu0 0.0
    %1457 = vmatprep.subr.mxu0 0.0
    %1458 = vmatpush2.msra.mxu0 0.0
    %1459 = vmatprep.subr.mxu0 0.0
    %1460 = vmatpush2.msra.mxu0 0.0
    %1461 = vmatprep.subr.mxu0 0.0
    %1462 = vmatpush2.msra.mxu0 0.0
    %1463 = vmatprep.subr.mxu0 0.0
    %1464 = vmatpush2.msra.mxu0 0.0
    %1465 = vmatprep.subr.mxu0 0.0
    %1466 = vmatpush2.msra.mxu0 0.0
    %1467 = vmatprep.subr.mxu0 0.0
    %1468 = vmatpush2.msra.mxu0 0.0
    %1469 = vmatprep.subr.mxu0 0.0
    %1470 = vmatpush2.msra.mxu0 0.0
    %1471 = vmatprep.mubr.f32.mxu0 0.0
    %v1472 = vand.u32 %v1121, 4294901760
    %v1473 = vsub.f32 %v1121, %v1472
    %v1474 = vand.u32 %v1473, 4294901760
    %1475 = vmatmul.mubr.f32.gmra.mxu0 %v1474
    %v1476 = vpop.f32.mrf.mxu0
    %v1477 = vadd.f32 %v1397, %v1476
    %v1478 = vpop.f32.mrf.mxu0
    %1479 = vdwg.mxu0
    %1480 = vmatprep.subr.mxu0 0.0
    %1481 = vmatpush1.msra.mxu0 0.0
    %1482 = vmatprep.subr.mxu0 0.0
    %1483 = vmatpush1.msra.mxu0 0.0
    %1484 = vmatprep.subr.mxu0 0.0
    %1485 = vmatpush1.msra.mxu0 0.0
    %1486 = vmatprep.subr.mxu0 0.0
    %1487 = vmatpush1.msra.mxu0 0.0
    %1488 = vmatprep.subr.mxu0 0.0
    %1489 = vmatpush1.msra.mxu0 0.0
    %1490 = vmatprep.subr.mxu0 0.0
    %1491 = vmatpush1.msra.mxu0 0.0
    %1492 = vmatprep.subr.mxu0 0.0
    %1493 = vmatpush1.msra.mxu0 0.0
    %1494 = vmatprep.subr.mxu0 0.0
    %1495 = vmatpush1.msra.mxu0 0.0
    %1496 = vmatprep.subr.mxu0 0.0
    %1497 = vmatpush1.msra.mxu0 0.0
    %1498 = vmatprep.subr.mxu0 0.0
    %v1499 = vand.u32 %v1124, 4294901760
    %v1500 = vsub.f32 %v1124, %v1499
    %v1501 = vand.u32 %v1500, 4294901760
    %1502 = vmatpush1.msra.mxu0 %v1501
    %1503 = vmatprep.subr.mxu0 0.0
    %v1504 = vand.u32 %v1118, 4294901760
    %v1505 = vsub.f32 %v1118, %v1504
    %v1506 = vand.u32 %v1505, 4294901760
    %1507 = vmatpush1.msra.mxu0 %v1506
    %1508 = vmatprep.subr.mxu0 0.0
    %v1509 = vand.u32 %v1117, 4294901760
    %v1510 = vsub.f32 %v1117, %v1509
    %v1511 = vand.u32 %v1510, 4294901760
    %1512 = vmatpush1.msra.mxu0 %v1511
    %1513 = vmatprep.subr.mxu0 0.0
    %v1514 = vand.u32 %v1116, 4294901760
    %v1515 = vsub.f32 %v1116, %v1514
    %v1516 = vand.u32 %v1515, 4294901760
    %1517 = vmatpush1.msra.mxu0 %v1516
    %1518 = vmatprep.subr.mxu0 0.0
    %v1519 = vand.u32 %v1115, 4294901760
    %v1520 = vsub.f32 %v1115, %v1519
    %v1521 = vand.u32 %v1520, 4294901760
    %1522 = vmatpush1.msra.mxu0 %v1521
    %1523 = vmatprep.subr.mxu0 0.0
    %v1524 = vand.u32 %v1114, 4294901760
    %v1525 = vsub.f32 %v1114, %v1524
    %v1526 = vand.u32 %v1525, 4294901760
    %1527 = vmatpush1.msra.mxu0 %v1526
    %1528 = vmatprep.subr.mxu0 0.0
    %v1529 = vand.u32 %v1113, 4294901760
    %v1530 = vsub.f32 %v1113, %v1529
    %v1531 = vand.u32 %v1530, 4294901760
    %1532 = vmatpush1.msra.mxu0 %v1531
    %1533 = vmatprep.subr.mxu0 0.0
    %1534 = vmatpush2.msra.mxu0 0.0
    %1535 = vmatprep.subr.mxu0 0.0
    %1536 = vmatpush2.msra.mxu0 0.0
    %1537 = vmatprep.subr.mxu0 0.0
    %1538 = vmatpush2.msra.mxu0 0.0
    %1539 = vmatprep.subr.mxu0 0.0
    %1540 = vmatpush2.msra.mxu0 0.0
    %1541 = vmatprep.subr.mxu0 0.0
    %1542 = vmatpush2.msra.mxu0 0.0
    %1543 = vmatprep.subr.mxu0 0.0
    %1544 = vmatpush2.msra.mxu0 0.0
    %1545 = vmatprep.subr.mxu0 0.0
    %1546 = vmatpush2.msra.mxu0 0.0
    %1547 = vmatprep.subr.mxu0 0.0
    %1548 = vmatpush2.msra.mxu0 0.0
    %1549 = vmatprep.subr.mxu0 0.0
    %1550 = vmatpush2.msra.mxu0 0.0
    %1551 = vmatprep.subr.mxu0 0.0
    %1552 = vmatpush2.msra.mxu0 0.0
    %1553 = vmatprep.subr.mxu0 0.0
    %1554 = vmatpush2.msra.mxu0 0.0
    %1555 = vmatprep.subr.mxu0 0.0
    %1556 = vmatpush2.msra.mxu0 0.0
    %1557 = vmatprep.subr.mxu0 0.0
    %1558 = vmatpush2.msra.mxu0 0.0
    %1559 = vmatprep.subr.mxu0 0.0
    %1560 = vmatpush2.msra.mxu0 0.0
    %1561 = vmatprep.subr.mxu0 0.0
    %1562 = vmatpush2.msra.mxu0 0.0
    %1563 = vmatprep.subr.mxu0 0.0
    %1564 = vmatpush2.msra.mxu0 0.0
    %1565 = vmatprep.mubr.f32.mxu0 0.0
    %v1566 = vand.u32 %v1121, 4294901760
    %1567 = vmatmul.mubr.f32.gmra.mxu0 %v1566
    %v1568 = vpop.f32.mrf.mxu0
    %v1569 = vadd.f32 %v1477, %v1568
    %v1570 = vpop.f32.mrf.mxu0
    %1571 = vdwg.mxu0
    %1572 = vmatprep.subr.mxu0 0.0
    %1573 = vmatpush1.msra.mxu0 0.0
    %1574 = vmatprep.subr.mxu0 0.0
    %1575 = vmatpush1.msra.mxu0 0.0
    %1576 = vmatprep.subr.mxu0 0.0
    %1577 = vmatpush1.msra.mxu0 0.0
    %1578 = vmatprep.subr.mxu0 0.0
    %1579 = vmatpush1.msra.mxu0 0.0
    %1580 = vmatprep.subr.mxu0 0.0
    %1581 = vmatpush1.msra.mxu0 0.0
    %1582 = vmatprep.subr.mxu0 0.0
    %1583 = vmatpush1.msra.mxu0 0.0
    %1584 = vmatprep.subr.mxu0 0.0
    %1585 = vmatpush1.msra.mxu0 0.0
    %1586 = vmatprep.subr.mxu0 0.0
    %1587 = vmatpush1.msra.mxu0 0.0
    %1588 = vmatprep.subr.mxu0 0.0
    %1589 = vmatpush1.msra.mxu0 0.0
    %1590 = vmatprep.subr.mxu0 0.0
    %v1591 = vand.u32 %v1124, 4294901760
    %1592 = vmatpush1.msra.mxu0 %v1591
    %1593 = vmatprep.subr.mxu0 0.0
    %v1594 = vand.u32 %v1118, 4294901760
    %1595 = vmatpush1.msra.mxu0 %v1594
    %1596 = vmatprep.subr.mxu0 0.0
    %v1597 = vand.u32 %v1117, 4294901760
    %1598 = vmatpush1.msra.mxu0 %v1597
    %1599 = vmatprep.subr.mxu0 0.0
    %v1600 = vand.u32 %v1116, 4294901760
    %1601 = vmatpush1.msra.mxu0 %v1600
    %1602 = vmatprep.subr.mxu0 0.0
    %v1603 = vand.u32 %v1115, 4294901760
    %1604 = vmatpush1.msra.mxu0 %v1603
    %1605 = vmatprep.subr.mxu0 0.0
    %v1606 = vand.u32 %v1114, 4294901760
    %1607 = vmatpush1.msra.mxu0 %v1606
    %1608 = vmatprep.subr.mxu0 0.0
    %v1609 = vand.u32 %v1113, 4294901760
    %1610 = vmatpush1.msra.mxu0 %v1609
    %1611 = vmatprep.subr.mxu0 0.0
    %1612 = vmatpush2.msra.mxu0 0.0
    %1613 = vmatprep.subr.mxu0 0.0
    %1614 = vmatpush2.msra.mxu0 0.0
    %1615 = vmatprep.subr.mxu0 0.0
    %1616 = vmatpush2.msra.mxu0 0.0
    %1617 = vmatprep.subr.mxu0 0.0
    %1618 = vmatpush2.msra.mxu0 0.0
    %1619 = vmatprep.subr.mxu0 0.0
    %1620 = vmatpush2.msra.mxu0 0.0
    %1621 = vmatprep.subr.mxu0 0.0
    %1622 = vmatpush2.msra.mxu0 0.0
    %1623 = vmatprep.subr.mxu0 0.0
    %1624 = vmatpush2.msra.mxu0 0.0
    %1625 = vmatprep.subr.mxu0 0.0
    %1626 = vmatpush2.msra.mxu0 0.0
    %1627 = vmatprep.subr.mxu0 0.0
    %1628 = vmatpush2.msra.mxu0 0.0
    %1629 = vmatprep.subr.mxu0 0.0
    %1630 = vmatpush2.msra.mxu0 0.0
    %1631 = vmatprep.subr.mxu0 0.0
    %1632 = vmatpush2.msra.mxu0 0.0
    %1633 = vmatprep.subr.mxu0 0.0
    %1634 = vmatpush2.msra.mxu0 0.0
    %1635 = vmatprep.subr.mxu0 0.0
    %1636 = vmatpush2.msra.mxu0 0.0
    %1637 = vmatprep.subr.mxu0 0.0
    %1638 = vmatpush2.msra.mxu0 0.0
    %1639 = vmatprep.subr.mxu0 0.0
    %1640 = vmatpush2.msra.mxu0 0.0
    %1641 = vmatprep.subr.mxu0 0.0
    %1642 = vmatpush2.msra.mxu0 0.0
    %1643 = vmatprep.mubr.f32.mxu0 0.0
    %v1644 = vand.u32 %v1121, 4294901760
    %1645 = vmatmul.mubr.f32.gmra.mxu0 %v1644
    %v1646 = vpop.f32.mrf.mxu0
    %v1647 = vadd.f32 %v1569, %v1646
    %v1648 = vpop.f32.mrf.mxu0
    %1649 = vdwg.mxu0
    %vm1650 = vcmask 130048
    %1651 = vst.msk [vmem:[#allocation5] sm:$0xff] %vm1650, %v1647
    // Predicated region
    $region22: #{tpu_custom_call.1} parent=1 // pred_check
      _
    $region23: #{tpu_custom_call.1} parent=1 // pred_check_branch
      %1653 = sbr.rel (0) target = $region25
    $region24: #{tpu_custom_call.1} parent=1 // pred_region
      %s1655 = ssub.s32 128, 128
      %1656 = vsyncadd [#allocation4], %s1655
      %s1658 = sshll.u32 [#allocation5], 4
      %s1659 = int_to_ptr.vmem [resolvable:$true] %s1658
      %1661 = dma.vmem_to_hbm [thread:$0]  %s1659, 128, %s4, [#allocation4]
    $region25: #{tpu_custom_call.1} parent=1 // pred_fallthru
      _
    // Predicated region
    $region26: #{tpu_custom_call.1} parent=1 // pred_check
      _
    $region27: #{tpu_custom_call.1} parent=1 // pred_check_branch
      %1663 = sbr.rel (0) target = $region29
    $region28: #{tpu_custom_call.1} parent=1 // pred_region
      %1664 = dma.done [#allocation4], 128
    $region29: #{tpu_custom_call.1} parent=1 // pred_fallthru
      _
    %1665 = vsyncpa [#allocation3], 1
    %1666 = vsyncpa [#allocation4], 1

</llo_original>
